<compile_context>
chip_gen: v6e
topology: v6e:2x2x1
jax: 0.10.0
libtpu: 0.0.40
codegen_flags: <defaults>
</compile_context>

<pallas_src>
import functools

import jax
import jax.numpy as jnp
from jax.experimental import pallas as pl
from jax.experimental.pallas import tpu as pltpu


OP_KERNEL_SIZES = (1, 3, 5)
NUM_OPS = len(OP_KERNEL_SIZES)
KMAX = max(OP_KERNEL_SIZES)


# ----------------------------- Pallas kernel -------------------------------

def _mixed_layer_kernel(*refs, num_ops, cout, has_skip, has_residual, has_head):
    """One fused MixedLayer step; grid=(1,), everything resident in VMEM.

    Computes all candidate branches with a single MXU matmul on 5x5 im2col
    patches, adds the per-branch bias, applies the per-sample one-hot branch
    selection, and optionally fuses the skip path (1x1 SNConv2d or identity
    residual add) and the final relu -> spatial-sum -> SNLinear head.
    """
    it = iter(refs)
    a_ref = next(it)       # (Kd, M)        bf16  im2col patches (lane-dense in M)
    w_ref = next(it)       # (G, Kd)        bf16  fused candidate weights, G=num_ops*cout
    b_ref = next(it)       # (G, 1)         f32   fused candidate biases
    sel_ref = next(it)     # (num_ops, M)   f32   per-sample one-hot branch mask
    if has_skip:
        sin_ref = next(it)  # (Cin_skip, M) bf16  downsampled skip input
        sw_ref = next(it)   # (cout, Cin_skip) bf16
        sb_ref = next(it)   # (cout, 1)     f32
    if has_residual:
        res_ref = next(it)  # (cout, M)     f32   identity skip branch
    if has_head:
        pool_ref = next(it)  # (M, N)       f32   per-sample spatial pooling matrix
        wl_ref = next(it)    # (1, cout)    f32   SNLinear weight
        bl_ref = next(it)    # (1, 1)       f32   SNLinear bias
    o_ref = next(it)

    # All candidate ops in one MXU pass: (G, Kd) @ (Kd, M) -> (G, M) f32.
    y = jnp.dot(w_ref[...], a_ref[...], preferred_element_type=jnp.float32)
    y = y + b_ref[...]

    # One-hot branch mixing (equivalent to einsum('nk,knhwc->nhwc')).
    sel = sel_ref[...]
    out = sel[0:1, :] * y[0:cout, :]
    for k in range(1, num_ops):
        out = out + sel[k:k + 1, :] * y[k * cout:(k + 1) * cout, :]

    if has_skip:      # fused SNConv2d 1x1 on the (already downsampled) skip input
        out = out + (jnp.dot(sw_ref[...], sin_ref[...],
                             preferred_element_type=jnp.float32) + sb_ref[...])
    if has_residual:  # identity skip branch
        out = out + res_ref[...]

    if has_head:      # fused torch.sum(torch.relu(x), [2, 3]) -> SNLinear
        r = jnp.maximum(out, 0.0)                                    # (cout, M)
        s = jnp.dot(r, pool_ref[...],
                    preferred_element_type=jnp.float32)              # (cout, N)
        o_ref[...] = (jnp.dot(wl_ref[...], s,
                              preferred_element_type=jnp.float32) + bl_ref[...])
    else:
        o_ref[...] = out


def _full_spec(shape):
    nd = len(shape)
    return pl.BlockSpec(shape, lambda i, nd=nd: (0,) * nd)


def mixed_layer_call(x_cnhw, sample_arc, w_cat, b_cat, cout, *,
                     skip_in=None, skip_w=None, skip_b=None,
                     residual=None, head=None):
    """One fused MixedLayer forward: glue im2col + single Pallas kernel."""
    C, N, H, W = x_cnhw.shape
    M = N * H * W
    pad = KMAX // 2

    # Pre-activation ReLU applied once BEFORE patch extraction.
    xr = jnp.maximum(x_cnhw, 0.0)
    xp = jnp.pad(xr, ((0, 0), (0, 0), (pad, pad), (pad, pad)))
    wins = [xp[:, :, kh:kh + H, kw:kw + W]
            for kh in range(KMAX) for kw in range(KMAX)]
    patches = jnp.stack(wins, axis=0).reshape(KMAX * KMAX * C, M)
    patches = patches.astype(jnp.bfloat16)                         # (Kd, M)

    onehot = jax.nn.one_hot(sample_arc, NUM_OPS, dtype=jnp.float32)  # (N, O)
    sel = jnp.repeat(onehot.T, H * W, axis=1)                        # (O, M)

    inputs = [patches, w_cat, b_cat, sel]
    has_skip = skip_w is not None
    has_residual = residual is not None
    has_head = head is not None
    if has_skip:
        inputs += [skip_in.reshape(skip_in.shape[0], M).astype(jnp.bfloat16),
                   skip_w, skip_b]
    if has_residual:
        inputs += [residual.reshape(cout, M).astype(jnp.float32)]
    if has_head:
        w_lin, b_lin = head
        pool = (jnp.arange(M)[:, None] // (H * W)
                == jnp.arange(N)[None, :]).astype(jnp.float32)      # (M, N)
        inputs += [pool, w_lin, b_lin]
        out_shape = jax.ShapeDtypeStruct((1, N), jnp.float32)
    else:
        out_shape = jax.ShapeDtypeStruct((cout, M), jnp.float32)

    kernel = functools.partial(
        _mixed_layer_kernel, num_ops=NUM_OPS, cout=cout,
        has_skip=has_skip, has_residual=has_residual, has_head=has_head)

    return pl.pallas_call(
        kernel,
        out_shape=out_shape,
        grid=(1,),
        in_specs=[_full_spec(t.shape) for t in inputs],
        out_specs=_full_spec(out_shape.shape),
        compiler_params=pltpu.CompilerParams(
            dimension_semantics=("arbitrary",)),
    )(*inputs)


# ------------------------------- JAX glue ----------------------------------

def avg_pool_2x2(x_cnhw):
    """DownSample() == nn.AvgPool2d(2), on (C, N, H, W) activations."""
    C, N, H, W = x_cnhw.shape
    return x_cnhw.reshape(C, N, H // 2, 2, W // 2, 2).mean(axis=(3, 5))


def d_arch(ch):
    """Synthetic BigGAN-style discriminator arch for resolution 16 (3 blocks)."""
    return {
        'in_channels': [3, 4 * ch, 4 * ch],
        'out_channels': [4 * ch, 4 * ch, 4 * ch],
        'downsample': [True, True, False],
    }


def _sn(w_mat_out_in, key, eps=1e-6):
    """One power iteration of spectral norm (num_svs=num_itrs=1) at setup time."""
    u = jax.random.normal(key, (1, w_mat_out_in.shape[0]), dtype=jnp.float32)
    v = u @ w_mat_out_in
    v = v / (jnp.linalg.norm(v) + eps)
    u2 = v @ w_mat_out_in.T
    u2 = u2 / (jnp.linalg.norm(u2) + eps)
    sigma = (v @ w_mat_out_in.T @ u2.T)[0, 0]
    return w_mat_out_in / sigma


def make_fused_mixed_weights(key, cin, cout):
    """N02 init + spectral norm per candidate op, fused into one (3*Cout, 25*Cin)
    transposed matmul weight (smaller kernels zero-embedded, centered, in 5x5)."""
    ws, bs = [], []
    for K, kk in zip(OP_KERNEL_SIZES, jax.random.split(key, NUM_OPS)):
        k_w, k_u = jax.random.split(kk)
        w = 0.02 * jax.random.normal(k_w, (cout, cin, K, K), dtype=jnp.float32)
        w = _sn(w.reshape(cout, -1), k_u).reshape(cout, cin, K, K)
        off = (KMAX - K) // 2
        w5 = jnp.zeros((cout, cin, KMAX, KMAX), jnp.float32)
        w5 = w5.at[:, :, off:off + K, off:off + K].set(w)
        # (cout, cin, kh, kw) -> (cout, kh, kw, cin) -> (cout, 25*cin)
        ws.append(jnp.transpose(w5, (0, 2, 3, 1)).reshape(cout, KMAX * KMAX * cin))
        # TODO(synk): PyTorch conv bias keeps its default uniform init; zeros here.
        bs.append(jnp.zeros((cout,), jnp.float32))
    w_cat = jnp.concatenate(ws, axis=0).astype(jnp.bfloat16)     # (3*cout, Kd)
    b_cat = jnp.concatenate(bs, axis=0).reshape(-1, 1)           # (3*cout, 1)
    return w_cat, b_cat


def make_skip_conv_params(key, cin, cout):
    k_w, k_u = jax.random.split(key)
    w = 0.02 * jax.random.normal(k_w, (cout, cin), dtype=jnp.float32)
    w = _sn(w, k_u)
    return w.astype(jnp.bfloat16), jnp.zeros((cout, 1), jnp.float32)


class SharedDiscriminatorNoSkipPallas:
    NUM_CONV_IN_BLOCK = 2

    def __init__(self, key, ch=1):
        arch = d_arch(ch)
        self.arch = arch
        self.num_layers = len(arch['in_channels']) * self.NUM_CONV_IN_BLOCK
        self.skip_layer_idx = [
            self.NUM_CONV_IN_BLOCK * l
            for l in range(self.num_layers // self.NUM_CONV_IN_BLOCK)
        ]
        keys = iter(jax.random.split(
            key, self.num_layers + len(self.skip_layer_idx) + 1))

        self.layer_params = []
        for layer_id in range(self.num_layers):
            block = layer_id // self.NUM_CONV_IN_BLOCK
            block_in = arch['in_channels'][block]
            block_out = arch['out_channels'][block]
            if layer_id % self.NUM_CONV_IN_BLOCK == 0:
                cin, cout = block_in, block_out
            else:
                cin, cout = block_out, block_out
            w_cat, b_cat = make_fused_mixed_weights(next(keys), cin, cout)
            downsample = (arch['downsample'][block]
                          and layer_id in self.skip_layer_idx)
            self.layer_params.append(
                {'w': w_cat, 'b': b_cat, 'cout': cout, 'downsample': downsample})

        self.skip_params = []
        for layer_id in self.skip_layer_idx:
            block = layer_id // self.NUM_CONV_IN_BLOCK
            block_in = arch['in_channels'][block]
            block_out = arch['out_channels'][block]
            if block_in != block_out:
                sw, sb = make_skip_conv_params(next(keys), block_in, block_out)
            else:
                _ = next(keys)
                sw, sb = None, None
            self.skip_params.append(
                {'downsample': arch['downsample'][block], 'w': sw, 'b': sb})

        # SNLinear(out_channels[-1], 1)
        c_last = arch['out_channels'][-1]
        k_w, k_u = jax.random.split(next(keys))
        w = 0.02 * jax.random.normal(k_w, (1, c_last), dtype=jnp.float32)
        self.w_lin = _sn(w, k_u)                        # (1, C)
        self.b_lin = jnp.zeros((1, 1), jnp.float32)

        self._jit_forward = jax.jit(self._forward)

    def _forward(self, x_nchw, sample_arcs):
        # NCHW -> channel-major (C, N, H, W): network-internal lane-dense layout.
        x = jnp.transpose(x_nchw, (1, 0, 2, 3)).astype(jnp.float32)
        prev = x
        ds_idx = 0
        for layer_id in range(self.num_layers):
            if layer_id == 0:
                prev = x
            arc = sample_arcs[:, layer_id]
            lp = self.layer_params[layer_id]
            is_last = layer_id == self.num_layers - 1
            add_skip = (layer_id - 1) in self.skip_layer_idx
            assert not (add_skip and lp['downsample'])

            skip_in = skip_w = skip_b = residual = None
            if add_skip:
                sp = self.skip_params[ds_idx]
                ds_idx += 1
                h = prev
                if sp['downsample']:
                    h = avg_pool_2x2(h)
                if sp['w'] is not None:
                    skip_in, skip_w, skip_b = h, sp['w'], sp['b']
                else:
                    residual = h

            _, n_b, h_sp, w_sp = x.shape
            out = mixed_layer_call(
                x, arc, lp['w'], lp['b'], lp['cout'],
                skip_in=skip_in, skip_w=skip_w, skip_b=skip_b,
                residual=residual,
                head=(self.w_lin, self.b_lin) if is_last else None)

            if is_last:
                return out.reshape(-1, 1)                # (N, 1)

            x = out.reshape(lp['cout'], n_b, h_sp, w_sp)
            if lp['downsample']:
                x = avg_pool_2x2(x)
            if add_skip:
                prev = x
        raise AssertionError("unreachable")

    def forward(self, x_nchw, sample_arcs):
        return self._jit_forward(x_nchw, sample_arcs)


if __name__ == "__main__":
    key = jax.random.PRNGKey(0)
    k_model, k_x, k_arc = jax.random.split(key, 3)

    model = SharedDiscriminatorNoSkipPallas(k_model, ch=1)

    # PyTorch-convention NCHW input at resolution 16; sample_arcs: (b, num_layers)
    x = jax.random.normal(k_x, (2, 3, 16, 16), dtype=jnp.float32)
    sample_arcs = jax.random.randint(
        k_arc, (2, model.num_layers), 0, NUM_OPS, dtype=jnp.int32)

    out = model.forward(x, sample_arcs)
    out = jax.block_until_ready(out)
    assert out.shape == (2, 1) and out.dtype == jnp.float32
    print("KERNEL_OK")
</pallas_src>

<mosaic_0001>
module attributes {stable_mosaic.version = 11 : i64} {
  func.func @_mixed_layer_kernel(%arg0: i32, %arg1: memref<75x512xbf16, #tpu.memory_space<vmem>>, %arg2: memref<12x75xbf16, #tpu.memory_space<vmem>>, %arg3: memref<12x1xf32, #tpu.memory_space<vmem>>, %arg4: memref<3x512xf32, #tpu.memory_space<vmem>>, %arg5: memref<4x512xf32, #tpu.memory_space<vmem>>) attributes {dimension_semantics = [#tpu.dimension_semantics<arbitrary>], iteration_bounds = array<i64: 1>, scalar_prefetch = 0 : i64, scratch_operands = 0 : i64, tpu.core_type = #tpu.core_type<tc>, window_params = [{pipeline_mode = #tpu.pipeline_mode<synchronous>, transform_indices = @transform_0, window_bounds = array<i64: 75, 512>}, {pipeline_mode = #tpu.pipeline_mode<synchronous>, transform_indices = @transform_1, window_bounds = array<i64: 12, 75>}, {pipeline_mode = #tpu.pipeline_mode<synchronous>, transform_indices = @transform_2, window_bounds = array<i64: 12, 1>}, {pipeline_mode = #tpu.pipeline_mode<synchronous>, transform_indices = @transform_3, window_bounds = array<i64: 3, 512>}, {pipeline_mode = #tpu.pipeline_mode<synchronous>, transform_indices = @transform_4, window_bounds = array<i64: 4, 512>}]} {
    %c0 = arith.constant 0 : index
    %c0_0 = arith.constant 0 : index
    %0 = vector.load %arg2[%c0, %c0_0] : memref<12x75xbf16, #tpu.memory_space<vmem>>, vector<12x75xbf16>
    %c0_1 = arith.constant 0 : index
    %c0_2 = arith.constant 0 : index
    %1 = vector.load %arg1[%c0_1, %c0_2] : memref<75x512xbf16, #tpu.memory_space<vmem>>, vector<75x512xbf16>
    %cst = arith.constant dense<0.000000e+00> : vector<12x512xf32>
    %2 = tpu.matmul %0, %1, %cst {dimension_numbers = #tpu.dot_dimension_numbers<[1], [0], [0], [1], [0, 0, 1, 1], [], []>} : vector<12x75xbf16>, vector<75x512xbf16>, vector<12x512xf32> -> vector<12x512xf32>
    %c0_3 = arith.constant 0 : index
    %c0_4 = arith.constant 0 : index
    %3 = vector.load %arg3[%c0_3, %c0_4] : memref<12x1xf32, #tpu.memory_space<vmem>>, vector<12x1xf32>
    %4 = vector.broadcast %3 : vector<12x1xf32> to vector<12x512xf32>
    %5 = arith.addf %2, %4 : vector<12x512xf32>
    %c0_5 = arith.constant 0 : index
    %c0_6 = arith.constant 0 : index
    %6 = vector.load %arg4[%c0_5, %c0_6] : memref<3x512xf32, #tpu.memory_space<vmem>>, vector<3x512xf32>
    %7 = vector.extract_strided_slice %6 {offsets = [0, 0], sizes = [1, 512], strides = [1, 1]} : vector<3x512xf32> to vector<1x512xf32>
    %8 = vector.extract_strided_slice %5 {offsets = [0, 0], sizes = [4, 512], strides = [1, 1]} : vector<12x512xf32> to vector<4x512xf32>
    %9 = vector.broadcast %7 : vector<1x512xf32> to vector<4x512xf32>
    %10 = arith.mulf %9, %8 : vector<4x512xf32>
    %11 = vector.extract_strided_slice %6 {offsets = [1, 0], sizes = [1, 512], strides = [1, 1]} : vector<3x512xf32> to vector<1x512xf32>
    %12 = vector.extract_strided_slice %5 {offsets = [4, 0], sizes = [4, 512], strides = [1, 1]} : vector<12x512xf32> to vector<4x512xf32>
    %13 = vector.broadcast %11 : vector<1x512xf32> to vector<4x512xf32>
    %14 = arith.mulf %13, %12 : vector<4x512xf32>
    %15 = arith.addf %10, %14 : vector<4x512xf32>
    %16 = vector.extract_strided_slice %6 {offsets = [2, 0], sizes = [1, 512], strides = [1, 1]} : vector<3x512xf32> to vector<1x512xf32>
    %17 = vector.extract_strided_slice %5 {offsets = [8, 0], sizes = [4, 512], strides = [1, 1]} : vector<12x512xf32> to vector<4x512xf32>
    %18 = vector.broadcast %16 : vector<1x512xf32> to vector<4x512xf32>
    %19 = arith.mulf %18, %17 : vector<4x512xf32>
    %20 = arith.addf %15, %19 : vector<4x512xf32>
    %c0_7 = arith.constant 0 : index
    %c0_8 = arith.constant 0 : index
    %21 = vector.load %arg5[%c0_7, %c0_8] : memref<4x512xf32, #tpu.memory_space<vmem>>, vector<4x512xf32>
    tpu.vector_store %arg5[%c0_7, %c0_8], %20 {strides = array<i32>} : memref<4x512xf32, #tpu.memory_space<vmem>>, vector<4x512xf32>,
    return
  }
  func.func @transform_0(%arg0: i32) -> (i32, i32) {
    %c0_i32 = arith.constant 0 : i32
    %c0_i32_0 = arith.constant 0 : i32
    %c0_i32_1 = arith.constant 0 : i32
    return %c0_i32, %c0_i32_0 : i32, i32
  }
  func.func @transform_1(%arg0: i32) -> (i32, i32) {
    %c0_i32 = arith.constant 0 : i32
    %c0_i32_0 = arith.constant 0 : i32
    %c0_i32_1 = arith.constant 0 : i32
    return %c0_i32, %c0_i32_0 : i32, i32
  }
  func.func @transform_2(%arg0: i32) -> (i32, i32) {
    %c0_i32 = arith.constant 0 : i32
    %c0_i32_0 = arith.constant 0 : i32
    %c0_i32_1 = arith.constant 0 : i32
    return %c0_i32, %c0_i32_0 : i32, i32
  }
  func.func @transform_3(%arg0: i32) -> (i32, i32) {
    %c0_i32 = arith.constant 0 : i32
    %c0_i32_0 = arith.constant 0 : i32
    %c0_i32_1 = arith.constant 0 : i32
    return %c0_i32, %c0_i32_0 : i32, i32
  }
  func.func @transform_4(%arg0: i32) -> (i32, i32) {
    %c0_i32 = arith.constant 0 : i32
    %c0_i32_0 = arith.constant 0 : i32
    %c0_i32_1 = arith.constant 0 : i32
    return %c0_i32, %c0_i32_0 : i32, i32
  }
}

module attributes {stable_mosaic.version = 11 : i64} {
  func.func @_mixed_layer_kernel(%arg0: i32, %arg1: memref<100x128xbf16, #tpu.memory_space<vmem>>, %arg2: memref<12x100xbf16, #tpu.memory_space<vmem>>, %arg3: memref<12x1xf32, #tpu.memory_space<vmem>>, %arg4: memref<3x128xf32, #tpu.memory_space<vmem>>, %arg5: memref<3x128xbf16, #tpu.memory_space<vmem>>, %arg6: memref<4x3xbf16, #tpu.memory_space<vmem>>, %arg7: memref<4x1xf32, #tpu.memory_space<vmem>>, %arg8: memref<4x128xf32, #tpu.memory_space<vmem>>) attributes {dimension_semantics = [#tpu.dimension_semantics<arbitrary>], iteration_bounds = array<i64: 1>, scalar_prefetch = 0 : i64, scratch_operands = 0 : i64, tpu.core_type = #tpu.core_type<tc>, window_params = [{pipeline_mode = #tpu.pipeline_mode<synchronous>, transform_indices = @transform_0, window_bounds = array<i64: 100, 128>}, {pipeline_mode = #tpu.pipeline_mode<synchronous>, transform_indices = @transform_1, window_bounds = array<i64: 12, 100>}, {pipeline_mode = #tpu.pipeline_mode<synchronous>, transform_indices = @transform_2, window_bounds = array<i64: 12, 1>}, {pipeline_mode = #tpu.pipeline_mode<synchronous>, transform_indices = @transform_3, window_bounds = array<i64: 3, 128>}, {pipeline_mode = #tpu.pipeline_mode<synchronous>, transform_indices = @transform_4, window_bounds = array<i64: 3, 128>}, {pipeline_mode = #tpu.pipeline_mode<synchronous>, transform_indices = @transform_5, window_bounds = array<i64: 4, 3>}, {pipeline_mode = #tpu.pipeline_mode<synchronous>, transform_indices = @transform_6, window_bounds = array<i64: 4, 1>}, {pipeline_mode = #tpu.pipeline_mode<synchronous>, transform_indices = @transform_7, window_bounds = array<i64: 4, 128>}]} {
    %c0 = arith.constant 0 : index
    %c0_0 = arith.constant 0 : index
    %0 = vector.load %arg2[%c0, %c0_0] : memref<12x100xbf16, #tpu.memory_space<vmem>>, vector<12x100xbf16>
    %c0_1 = arith.constant 0 : index
    %c0_2 = arith.constant 0 : index
    %1 = vector.load %arg1[%c0_1, %c0_2] : memref<100x128xbf16, #tpu.memory_space<vmem>>, vector<100x128xbf16>
    %cst = arith.constant dense<0.000000e+00> : vector<12x128xf32>
    %2 = tpu.matmul %0, %1, %cst {dimension_numbers = #tpu.dot_dimension_numbers<[1], [0], [0], [1], [0, 0, 1, 1], [], []>} : vector<12x100xbf16>, vector<100x128xbf16>, vector<12x128xf32> -> vector<12x128xf32>
    %c0_3 = arith.constant 0 : index
    %c0_4 = arith.constant 0 : index
    %3 = vector.load %arg3[%c0_3, %c0_4] : memref<12x1xf32, #tpu.memory_space<vmem>>, vector<12x1xf32>
    %4 = vector.broadcast %3 : vector<12x1xf32> to vector<12x128xf32>
    %5 = arith.addf %2, %4 : vector<12x128xf32>
    %c0_5 = arith.constant 0 : index
    %c0_6 = arith.constant 0 : index
    %6 = vector.load %arg4[%c0_5, %c0_6] : memref<3x128xf32, #tpu.memory_space<vmem>>, vector<3x128xf32>
    %7 = vector.extract_strided_slice %6 {offsets = [0, 0], sizes = [1, 128], strides = [1, 1]} : vector<3x128xf32> to vector<1x128xf32>
    %8 = vector.extract_strided_slice %5 {offsets = [0, 0], sizes = [4, 128], strides = [1, 1]} : vector<12x128xf32> to vector<4x128xf32>
    %9 = vector.broadcast %7 : vector<1x128xf32> to vector<4x128xf32>
    %10 = arith.mulf %9, %8 : vector<4x128xf32>
    %11 = vector.extract_strided_slice %6 {offsets = [1, 0], sizes = [1, 128], strides = [1, 1]} : vector<3x128xf32> to vector<1x128xf32>
    %12 = vector.extract_strided_slice %5 {offsets = [4, 0], sizes = [4, 128], strides = [1, 1]} : vector<12x128xf32> to vector<4x128xf32>
    %13 = vector.broadcast %11 : vector<1x128xf32> to vector<4x128xf32>
    %14 = arith.mulf %13, %12 : vector<4x128xf32>
    %15 = arith.addf %10, %14 : vector<4x128xf32>
    %16 = vector.extract_strided_slice %6 {offsets = [2, 0], sizes = [1, 128], strides = [1, 1]} : vector<3x128xf32> to vector<1x128xf32>
    %17 = vector.extract_strided_slice %5 {offsets = [8, 0], sizes = [4, 128], strides = [1, 1]} : vector<12x128xf32> to vector<4x128xf32>
    %18 = vector.broadcast %16 : vector<1x128xf32> to vector<4x128xf32>
    %19 = arith.mulf %18, %17 : vector<4x128xf32>
    %20 = arith.addf %15, %19 : vector<4x128xf32>
    %c0_7 = arith.constant 0 : index
    %c0_8 = arith.constant 0 : index
    %21 = vector.load %arg6[%c0_7, %c0_8] : memref<4x3xbf16, #tpu.memory_space<vmem>>, vector<4x3xbf16>
    %c0_9 = arith.constant 0 : index
    %c0_10 = arith.constant 0 : index
    %22 = vector.load %arg5[%c0_9, %c0_10] : memref<3x128xbf16, #tpu.memory_space<vmem>>, vector<3x128xbf16>
    %cst_11 = arith.constant dense<0.000000e+00> : vector<4x128xf32>
    %23 = tpu.matmul %21, %22, %cst_11 {dimension_numbers = #tpu.dot_dimension_numbers<[1], [0], [0], [1], [0, 0, 1, 1], [], []>} : vector<4x3xbf16>, vector<3x128xbf16>, vector<4x128xf32> -> vector<4x128xf32>
    %c0_12 = arith.constant 0 : index
    %c0_13 = arith.constant 0 : index
    %24 = vector.load %arg7[%c0_12, %c0_13] : memref<4x1xf32, #tpu.memory_space<vmem>>, vector<4x1xf32>
    %25 = vector.broadcast %24 : vector<4x1xf32> to vector<4x128xf32>
    %26 = arith.addf %23, %25 : vector<4x128xf32>
    %27 = arith.addf %20, %26 : vector<4x128xf32>
    %c0_14 = arith.constant 0 : index
    %c0_15 = arith.constant 0 : index
    %28 = vector.load %arg8[%c0_14, %c0_15] : memref<4x128xf32, #tpu.memory_space<vmem>>, vector<4x128xf32>
    tpu.vector_store %arg8[%c0_14, %c0_15], %27 {strides = array<i32>} : memref<4x128xf32, #tpu.memory_space<vmem>>, vector<4x128xf32>,
    return
  }
  func.func @transform_0(%arg0: i32) -> (i32, i32) {
    %c0_i32 = arith.constant 0 : i32
    %c0_i32_0 = arith.constant 0 : i32
    %c0_i32_1 = arith.constant 0 : i32
    return %c0_i32, %c0_i32_0 : i32, i32
  }
  func.func @transform_1(%arg0: i32) -> (i32, i32) {
    %c0_i32 = arith.constant 0 : i32
    %c0_i32_0 = arith.constant 0 : i32
    %c0_i32_1 = arith.constant 0 : i32
    return %c0_i32, %c0_i32_0 : i32, i32
  }
  func.func @transform_2(%arg0: i32) -> (i32, i32) {
    %c0_i32 = arith.constant 0 : i32
    %c0_i32_0 = arith.constant 0 : i32
    %c0_i32_1 = arith.constant 0 : i32
    return %c0_i32, %c0_i32_0 : i32, i32
  }
  func.func @transform_3(%arg0: i32) -> (i32, i32) {
    %c0_i32 = arith.constant 0 : i32
    %c0_i32_0 = arith.constant 0 : i32
    %c0_i32_1 = arith.constant 0 : i32
    return %c0_i32, %c0_i32_0 : i32, i32
  }
  func.func @transform_4(%arg0: i32) -> (i32, i32) {
    %c0_i32 = arith.constant 0 : i32
    %c0_i32_0 = arith.constant 0 : i32
    %c0_i32_1 = arith.constant 0 : i32
    return %c0_i32, %c0_i32_0 : i32, i32
  }
  func.func @transform_5(%arg0: i32) -> (i32, i32) {
    %c0_i32 = arith.constant 0 : i32
    %c0_i32_0 = arith.constant 0 : i32
    %c0_i32_1 = arith.constant 0 : i32
    return %c0_i32, %c0_i32_0 : i32, i32
  }
  func.func @transform_6(%arg0: i32) -> (i32, i32) {
    %c0_i32 = arith.constant 0 : i32
    %c0_i32_0 = arith.constant 0 : i32
    %c0_i32_1 = arith.constant 0 : i32
    return %c0_i32, %c0_i32_0 : i32, i32
  }
  func.func @transform_7(%arg0: i32) -> (i32, i32) {
    %c0_i32 = arith.constant 0 : i32
    %c0_i32_0 = arith.constant 0 : i32
    %c0_i32_1 = arith.constant 0 : i32
    return %c0_i32, %c0_i32_0 : i32, i32
  }
}

module attributes {stable_mosaic.version = 11 : i64} {
  func.func @_mixed_layer_kernel(%arg0: i32, %arg1: memref<100x128xbf16, #tpu.memory_space<vmem>>, %arg2: memref<12x100xbf16, #tpu.memory_space<vmem>>, %arg3: memref<12x1xf32, #tpu.memory_space<vmem>>, %arg4: memref<3x128xf32, #tpu.memory_space<vmem>>, %arg5: memref<4x128xf32, #tpu.memory_space<vmem>>) attributes {dimension_semantics = [#tpu.dimension_semantics<arbitrary>], iteration_bounds = array<i64: 1>, scalar_prefetch = 0 : i64, scratch_operands = 0 : i64, tpu.core_type = #tpu.core_type<tc>, window_params = [{pipeline_mode = #tpu.pipeline_mode<synchronous>, transform_indices = @transform_0, window_bounds = array<i64: 100, 128>}, {pipeline_mode = #tpu.pipeline_mode<synchronous>, transform_indices = @transform_1, window_bounds = array<i64: 12, 100>}, {pipeline_mode = #tpu.pipeline_mode<synchronous>, transform_indices = @transform_2, window_bounds = array<i64: 12, 1>}, {pipeline_mode = #tpu.pipeline_mode<synchronous>, transform_indices = @transform_3, window_bounds = array<i64: 3, 128>}, {pipeline_mode = #tpu.pipeline_mode<synchronous>, transform_indices = @transform_4, window_bounds = array<i64: 4, 128>}]} {
    %c0 = arith.constant 0 : index
    %c0_0 = arith.constant 0 : index
    %0 = vector.load %arg2[%c0, %c0_0] : memref<12x100xbf16, #tpu.memory_space<vmem>>, vector<12x100xbf16>
    %c0_1 = arith.constant 0 : index
    %c0_2 = arith.constant 0 : index
    %1 = vector.load %arg1[%c0_1, %c0_2] : memref<100x128xbf16, #tpu.memory_space<vmem>>, vector<100x128xbf16>
    %cst = arith.constant dense<0.000000e+00> : vector<12x128xf32>
    %2 = tpu.matmul %0, %1, %cst {dimension_numbers = #tpu.dot_dimension_numbers<[1], [0], [0], [1], [0, 0, 1, 1], [], []>} : vector<12x100xbf16>, vector<100x128xbf16>, vector<12x128xf32> -> vector<12x128xf32>
    %c0_3 = arith.constant 0 : index
    %c0_4 = arith.constant 0 : index
    %3 = vector.load %arg3[%c0_3, %c0_4] : memref<12x1xf32, #tpu.memory_space<vmem>>, vector<12x1xf32>
    %4 = vector.broadcast %3 : vector<12x1xf32> to vector<12x128xf32>
    %5 = arith.addf %2, %4 : vector<12x128xf32>
    %c0_5 = arith.constant 0 : index
    %c0_6 = arith.constant 0 : index
    %6 = vector.load %arg4[%c0_5, %c0_6] : memref<3x128xf32, #tpu.memory_space<vmem>>, vector<3x128xf32>
    %7 = vector.extract_strided_slice %6 {offsets = [0, 0], sizes = [1, 128], strides = [1, 1]} : vector<3x128xf32> to vector<1x128xf32>
    %8 = vector.extract_strided_slice %5 {offsets = [0, 0], sizes = [4, 128], strides = [1, 1]} : vector<12x128xf32> to vector<4x128xf32>
    %9 = vector.broadcast %7 : vector<1x128xf32> to vector<4x128xf32>
    %10 = arith.mulf %9, %8 : vector<4x128xf32>
    %11 = vector.extract_strided_slice %6 {offsets = [1, 0], sizes = [1, 128], strides = [1, 1]} : vector<3x128xf32> to vector<1x128xf32>
    %12 = vector.extract_strided_slice %5 {offsets = [4, 0], sizes = [4, 128], strides = [1, 1]} : vector<12x128xf32> to vector<4x128xf32>
    %13 = vector.broadcast %11 : vector<1x128xf32> to vector<4x128xf32>
    %14 = arith.mulf %13, %12 : vector<4x128xf32>
    %15 = arith.addf %10, %14 : vector<4x128xf32>
    %16 = vector.extract_strided_slice %6 {offsets = [2, 0], sizes = [1, 128], strides = [1, 1]} : vector<3x128xf32> to vector<1x128xf32>
    %17 = vector.extract_strided_slice %5 {offsets = [8, 0], sizes = [4, 128], strides = [1, 1]} : vector<12x128xf32> to vector<4x128xf32>
    %18 = vector.broadcast %16 : vector<1x128xf32> to vector<4x128xf32>
    %19 = arith.mulf %18, %17 : vector<4x128xf32>
    %20 = arith.addf %15, %19 : vector<4x128xf32>
    %c0_7 = arith.constant 0 : index
    %c0_8 = arith.constant 0 : index
    %21 = vector.load %arg5[%c0_7, %c0_8] : memref<4x128xf32, #tpu.memory_space<vmem>>, vector<4x128xf32>
    tpu.vector_store %arg5[%c0_7, %c0_8], %20 {strides = array<i32>} : memref<4x128xf32, #tpu.memory_space<vmem>>, vector<4x128xf32>,
    return
  }
  func.func @transform_0(%arg0: i32) -> (i32, i32) {
    %c0_i32 = arith.constant 0 : i32
    %c0_i32_0 = arith.constant 0 : i32
    %c0_i32_1 = arith.constant 0 : i32
    return %c0_i32, %c0_i32_0 : i32, i32
  }
  func.func @transform_1(%arg0: i32) -> (i32, i32) {
    %c0_i32 = arith.constant 0 : i32
    %c0_i32_0 = arith.constant 0 : i32
    %c0_i32_1 = arith.constant 0 : i32
    return %c0_i32, %c0_i32_0 : i32, i32
  }
  func.func @transform_2(%arg0: i32) -> (i32, i32) {
    %c0_i32 = arith.constant 0 : i32
    %c0_i32_0 = arith.constant 0 : i32
    %c0_i32_1 = arith.constant 0 : i32
    return %c0_i32, %c0_i32_0 : i32, i32
  }
  func.func @transform_3(%arg0: i32) -> (i32, i32) {
    %c0_i32 = arith.constant 0 : i32
    %c0_i32_0 = arith.constant 0 : i32
    %c0_i32_1 = arith.constant 0 : i32
    return %c0_i32, %c0_i32_0 : i32, i32
  }
  func.func @transform_4(%arg0: i32) -> (i32, i32) {
    %c0_i32 = arith.constant 0 : i32
    %c0_i32_0 = arith.constant 0 : i32
    %c0_i32_1 = arith.constant 0 : i32
    return %c0_i32, %c0_i32_0 : i32, i32
  }
}

module attributes {stable_mosaic.version = 11 : i64} {
  func.func @_mixed_layer_kernel(%arg0: i32, %arg1: memref<100x32xbf16, #tpu.memory_space<vmem>>, %arg2: memref<12x100xbf16, #tpu.memory_space<vmem>>, %arg3: memref<12x1xf32, #tpu.memory_space<vmem>>, %arg4: memref<3x32xf32, #tpu.memory_space<vmem>>, %arg5: memref<4x32xf32, #tpu.memory_space<vmem>>, %arg6: memref<4x32xf32, #tpu.memory_space<vmem>>) attributes {dimension_semantics = [#tpu.dimension_semantics<arbitrary>], iteration_bounds = array<i64: 1>, scalar_prefetch = 0 : i64, scratch_operands = 0 : i64, tpu.core_type = #tpu.core_type<tc>, window_params = [{pipeline_mode = #tpu.pipeline_mode<synchronous>, transform_indices = @transform_0, window_bounds = array<i64: 100, 32>}, {pipeline_mode = #tpu.pipeline_mode<synchronous>, transform_indices = @transform_1, window_bounds = array<i64: 12, 100>}, {pipeline_mode = #tpu.pipeline_mode<synchronous>, transform_indices = @transform_2, window_bounds = array<i64: 12, 1>}, {pipeline_mode = #tpu.pipeline_mode<synchronous>, transform_indices = @transform_3, window_bounds = array<i64: 3, 32>}, {pipeline_mode = #tpu.pipeline_mode<synchronous>, transform_indices = @transform_4, window_bounds = array<i64: 4, 32>}, {pipeline_mode = #tpu.pipeline_mode<synchronous>, transform_indices = @transform_5, window_bounds = array<i64: 4, 32>}]} {
    %c0 = arith.constant 0 : index
    %c0_0 = arith.constant 0 : index
    %0 = vector.load %arg2[%c0, %c0_0] : memref<12x100xbf16, #tpu.memory_space<vmem>>, vector<12x100xbf16>
    %c0_1 = arith.constant 0 : index
    %c0_2 = arith.constant 0 : index
    %1 = vector.load %arg1[%c0_1, %c0_2] : memref<100x32xbf16, #tpu.memory_space<vmem>>, vector<100x32xbf16>
    %cst = arith.constant dense<0.000000e+00> : vector<12x32xf32>
    %2 = tpu.matmul %0, %1, %cst {dimension_numbers = #tpu.dot_dimension_numbers<[1], [0], [0], [1], [0, 0, 1, 1], [], []>} : vector<12x100xbf16>, vector<100x32xbf16>, vector<12x32xf32> -> vector<12x32xf32>
    %c0_3 = arith.constant 0 : index
    %c0_4 = arith.constant 0 : index
    %3 = vector.load %arg3[%c0_3, %c0_4] : memref<12x1xf32, #tpu.memory_space<vmem>>, vector<12x1xf32>
    %4 = vector.broadcast %3 : vector<12x1xf32> to vector<12x32xf32>
    %5 = arith.addf %2, %4 : vector<12x32xf32>
    %c0_5 = arith.constant 0 : index
    %c0_6 = arith.constant 0 : index
    %6 = vector.load %arg4[%c0_5, %c0_6] : memref<3x32xf32, #tpu.memory_space<vmem>>, vector<3x32xf32>
    %7 = vector.extract_strided_slice %6 {offsets = [0, 0], sizes = [1, 32], strides = [1, 1]} : vector<3x32xf32> to vector<1x32xf32>
    %8 = vector.extract_strided_slice %5 {offsets = [0, 0], sizes = [4, 32], strides = [1, 1]} : vector<12x32xf32> to vector<4x32xf32>
    %9 = vector.broadcast %7 : vector<1x32xf32> to vector<4x32xf32>
    %10 = arith.mulf %9, %8 : vector<4x32xf32>
    %11 = vector.extract_strided_slice %6 {offsets = [1, 0], sizes = [1, 32], strides = [1, 1]} : vector<3x32xf32> to vector<1x32xf32>
    %12 = vector.extract_strided_slice %5 {offsets = [4, 0], sizes = [4, 32], strides = [1, 1]} : vector<12x32xf32> to vector<4x32xf32>
    %13 = vector.broadcast %11 : vector<1x32xf32> to vector<4x32xf32>
    %14 = arith.mulf %13, %12 : vector<4x32xf32>
    %15 = arith.addf %10, %14 : vector<4x32xf32>
    %16 = vector.extract_strided_slice %6 {offsets = [2, 0], sizes = [1, 32], strides = [1, 1]} : vector<3x32xf32> to vector<1x32xf32>
    %17 = vector.extract_strided_slice %5 {offsets = [8, 0], sizes = [4, 32], strides = [1, 1]} : vector<12x32xf32> to vector<4x32xf32>
    %18 = vector.broadcast %16 : vector<1x32xf32> to vector<4x32xf32>
    %19 = arith.mulf %18, %17 : vector<4x32xf32>
    %20 = arith.addf %15, %19 : vector<4x32xf32>
    %c0_7 = arith.constant 0 : index
    %c0_8 = arith.constant 0 : index
    %21 = vector.load %arg5[%c0_7, %c0_8] : memref<4x32xf32, #tpu.memory_space<vmem>>, vector<4x32xf32>
    %22 = arith.addf %20, %21 : vector<4x32xf32>
    %c0_9 = arith.constant 0 : index
    %c0_10 = arith.constant 0 : index
    %23 = vector.load %arg6[%c0_9, %c0_10] : memref<4x32xf32, #tpu.memory_space<vmem>>, vector<4x32xf32>
    tpu.vector_store %arg6[%c0_9, %c0_10], %22 {strides = array<i32>} : memref<4x32xf32, #tpu.memory_space<vmem>>, vector<4x32xf32>,
    return
  }
  func.func @transform_0(%arg0: i32) -> (i32, i32) {
    %c0_i32 = arith.constant 0 : i32
    %c0_i32_0 = arith.constant 0 : i32
    %c0_i32_1 = arith.constant 0 : i32
    return %c0_i32, %c0_i32_0 : i32, i32
  }
  func.func @transform_1(%arg0: i32) -> (i32, i32) {
    %c0_i32 = arith.constant 0 : i32
    %c0_i32_0 = arith.constant 0 : i32
    %c0_i32_1 = arith.constant 0 : i32
    return %c0_i32, %c0_i32_0 : i32, i32
  }
  func.func @transform_2(%arg0: i32) -> (i32, i32) {
    %c0_i32 = arith.constant 0 : i32
    %c0_i32_0 = arith.constant 0 : i32
    %c0_i32_1 = arith.constant 0 : i32
    return %c0_i32, %c0_i32_0 : i32, i32
  }
  func.func @transform_3(%arg0: i32) -> (i32, i32) {
    %c0_i32 = arith.constant 0 : i32
    %c0_i32_0 = arith.constant 0 : i32
    %c0_i32_1 = arith.constant 0 : i32
    return %c0_i32, %c0_i32_0 : i32, i32
  }
  func.func @transform_4(%arg0: i32) -> (i32, i32) {
    %c0_i32 = arith.constant 0 : i32
    %c0_i32_0 = arith.constant 0 : i32
    %c0_i32_1 = arith.constant 0 : i32
    return %c0_i32, %c0_i32_0 : i32, i32
  }
  func.func @transform_5(%arg0: i32) -> (i32, i32) {
    %c0_i32 = arith.constant 0 : i32
    %c0_i32_0 = arith.constant 0 : i32
    %c0_i32_1 = arith.constant 0 : i32
    return %c0_i32, %c0_i32_0 : i32, i32
  }
}

module attributes {stable_mosaic.version = 11 : i64} {
  func.func @_mixed_layer_kernel(%arg0: i32, %arg1: memref<100x32xbf16, #tpu.memory_space<vmem>>, %arg2: memref<12x100xbf16, #tpu.memory_space<vmem>>, %arg3: memref<12x1xf32, #tpu.memory_space<vmem>>, %arg4: memref<3x32xf32, #tpu.memory_space<vmem>>, %arg5: memref<4x32xf32, #tpu.memory_space<vmem>>) attributes {dimension_semantics = [#tpu.dimension_semantics<arbitrary>], iteration_bounds = array<i64: 1>, scalar_prefetch = 0 : i64, scratch_operands = 0 : i64, tpu.core_type = #tpu.core_type<tc>, window_params = [{pipeline_mode = #tpu.pipeline_mode<synchronous>, transform_indices = @transform_0, window_bounds = array<i64: 100, 32>}, {pipeline_mode = #tpu.pipeline_mode<synchronous>, transform_indices = @transform_1, window_bounds = array<i64: 12, 100>}, {pipeline_mode = #tpu.pipeline_mode<synchronous>, transform_indices = @transform_2, window_bounds = array<i64: 12, 1>}, {pipeline_mode = #tpu.pipeline_mode<synchronous>, transform_indices = @transform_3, window_bounds = array<i64: 3, 32>}, {pipeline_mode = #tpu.pipeline_mode<synchronous>, transform_indices = @transform_4, window_bounds = array<i64: 4, 32>}]} {
    %c0 = arith.constant 0 : index
    %c0_0 = arith.constant 0 : index
    %0 = vector.load %arg2[%c0, %c0_0] : memref<12x100xbf16, #tpu.memory_space<vmem>>, vector<12x100xbf16>
    %c0_1 = arith.constant 0 : index
    %c0_2 = arith.constant 0 : index
    %1 = vector.load %arg1[%c0_1, %c0_2] : memref<100x32xbf16, #tpu.memory_space<vmem>>, vector<100x32xbf16>
    %cst = arith.constant dense<0.000000e+00> : vector<12x32xf32>
    %2 = tpu.matmul %0, %1, %cst {dimension_numbers = #tpu.dot_dimension_numbers<[1], [0], [0], [1], [0, 0, 1, 1], [], []>} : vector<12x100xbf16>, vector<100x32xbf16>, vector<12x32xf32> -> vector<12x32xf32>
    %c0_3 = arith.constant 0 : index
    %c0_4 = arith.constant 0 : index
    %3 = vector.load %arg3[%c0_3, %c0_4] : memref<12x1xf32, #tpu.memory_space<vmem>>, vector<12x1xf32>
    %4 = vector.broadcast %3 : vector<12x1xf32> to vector<12x32xf32>
    %5 = arith.addf %2, %4 : vector<12x32xf32>
    %c0_5 = arith.constant 0 : index
    %c0_6 = arith.constant 0 : index
    %6 = vector.load %arg4[%c0_5, %c0_6] : memref<3x32xf32, #tpu.memory_space<vmem>>, vector<3x32xf32>
    %7 = vector.extract_strided_slice %6 {offsets = [0, 0], sizes = [1, 32], strides = [1, 1]} : vector<3x32xf32> to vector<1x32xf32>
    %8 = vector.extract_strided_slice %5 {offsets = [0, 0], sizes = [4, 32], strides = [1, 1]} : vector<12x32xf32> to vector<4x32xf32>
    %9 = vector.broadcast %7 : vector<1x32xf32> to vector<4x32xf32>
    %10 = arith.mulf %9, %8 : vector<4x32xf32>
    %11 = vector.extract_strided_slice %6 {offsets = [1, 0], sizes = [1, 32], strides = [1, 1]} : vector<3x32xf32> to vector<1x32xf32>
    %12 = vector.extract_strided_slice %5 {offsets = [4, 0], sizes = [4, 32], strides = [1, 1]} : vector<12x32xf32> to vector<4x32xf32>
    %13 = vector.broadcast %11 : vector<1x32xf32> to vector<4x32xf32>
    %14 = arith.mulf %13, %12 : vector<4x32xf32>
    %15 = arith.addf %10, %14 : vector<4x32xf32>
    %16 = vector.extract_strided_slice %6 {offsets = [2, 0], sizes = [1, 32], strides = [1, 1]} : vector<3x32xf32> to vector<1x32xf32>
    %17 = vector.extract_strided_slice %5 {offsets = [8, 0], sizes = [4, 32], strides = [1, 1]} : vector<12x32xf32> to vector<4x32xf32>
    %18 = vector.broadcast %16 : vector<1x32xf32> to vector<4x32xf32>
    %19 = arith.mulf %18, %17 : vector<4x32xf32>
    %20 = arith.addf %15, %19 : vector<4x32xf32>
    %c0_7 = arith.constant 0 : index
    %c0_8 = arith.constant 0 : index
    %21 = vector.load %arg5[%c0_7, %c0_8] : memref<4x32xf32, #tpu.memory_space<vmem>>, vector<4x32xf32>
    tpu.vector_store %arg5[%c0_7, %c0_8], %20 {strides = array<i32>} : memref<4x32xf32, #tpu.memory_space<vmem>>, vector<4x32xf32>,
    return
  }
  func.func @transform_0(%arg0: i32) -> (i32, i32) {
    %c0_i32 = arith.constant 0 : i32
    %c0_i32_0 = arith.constant 0 : i32
    %c0_i32_1 = arith.constant 0 : i32
    return %c0_i32, %c0_i32_0 : i32, i32
  }
  func.func @transform_1(%arg0: i32) -> (i32, i32) {
    %c0_i32 = arith.constant 0 : i32
    %c0_i32_0 = arith.constant 0 : i32
    %c0_i32_1 = arith.constant 0 : i32
    return %c0_i32, %c0_i32_0 : i32, i32
  }
  func.func @transform_2(%arg0: i32) -> (i32, i32) {
    %c0_i32 = arith.constant 0 : i32
    %c0_i32_0 = arith.constant 0 : i32
    %c0_i32_1 = arith.constant 0 : i32
    return %c0_i32, %c0_i32_0 : i32, i32
  }
  func.func @transform_3(%arg0: i32) -> (i32, i32) {
    %c0_i32 = arith.constant 0 : i32
    %c0_i32_0 = arith.constant 0 : i32
    %c0_i32_1 = arith.constant 0 : i32
    return %c0_i32, %c0_i32_0 : i32, i32
  }
  func.func @transform_4(%arg0: i32) -> (i32, i32) {
    %c0_i32 = arith.constant 0 : i32
    %c0_i32_0 = arith.constant 0 : i32
    %c0_i32_1 = arith.constant 0 : i32
    return %c0_i32, %c0_i32_0 : i32, i32
  }
}

module attributes {stable_mosaic.version = 11 : i64} {
  func.func @_mixed_layer_kernel(%arg0: i32, %arg1: memref<100x32xbf16, #tpu.memory_space<vmem>>, %arg2: memref<12x100xbf16, #tpu.memory_space<vmem>>, %arg3: memref<12x1xf32, #tpu.memory_space<vmem>>, %arg4: memref<3x32xf32, #tpu.memory_space<vmem>>, %arg5: memref<4x32xf32, #tpu.memory_space<vmem>>, %arg6: memref<32x2xf32, #tpu.memory_space<vmem>>, %arg7: memref<1x4xf32, #tpu.memory_space<vmem>>, %arg8: memref<1x1xf32, #tpu.memory_space<vmem>>, %arg9: memref<1x2xf32, #tpu.memory_space<vmem>>) attributes {dimension_semantics = [#tpu.dimension_semantics<arbitrary>], iteration_bounds = array<i64: 1>, scalar_prefetch = 0 : i64, scratch_operands = 0 : i64, tpu.core_type = #tpu.core_type<tc>, window_params = [{pipeline_mode = #tpu.pipeline_mode<synchronous>, transform_indices = @transform_0, window_bounds = array<i64: 100, 32>}, {pipeline_mode = #tpu.pipeline_mode<synchronous>, transform_indices = @transform_1, window_bounds = array<i64: 12, 100>}, {pipeline_mode = #tpu.pipeline_mode<synchronous>, transform_indices = @transform_2, window_bounds = array<i64: 12, 1>}, {pipeline_mode = #tpu.pipeline_mode<synchronous>, transform_indices = @transform_3, window_bounds = array<i64: 3, 32>}, {pipeline_mode = #tpu.pipeline_mode<synchronous>, transform_indices = @transform_4, window_bounds = array<i64: 4, 32>}, {pipeline_mode = #tpu.pipeline_mode<synchronous>, transform_indices = @transform_5, window_bounds = array<i64: 32, 2>}, {pipeline_mode = #tpu.pipeline_mode<synchronous>, transform_indices = @transform_6, window_bounds = array<i64: 1, 4>}, {pipeline_mode = #tpu.pipeline_mode<synchronous>, transform_indices = @transform_7, window_bounds = array<i64: 1, 1>}, {pipeline_mode = #tpu.pipeline_mode<synchronous>, transform_indices = @transform_8, window_bounds = array<i64: 1, 2>}]} {
    %c0 = arith.constant 0 : index
    %c0_0 = arith.constant 0 : index
    %0 = vector.load %arg2[%c0, %c0_0] : memref<12x100xbf16, #tpu.memory_space<vmem>>, vector<12x100xbf16>
    %c0_1 = arith.constant 0 : index
    %c0_2 = arith.constant 0 : index
    %1 = vector.load %arg1[%c0_1, %c0_2] : memref<100x32xbf16, #tpu.memory_space<vmem>>, vector<100x32xbf16>
    %cst = arith.constant dense<0.000000e+00> : vector<12x32xf32>
    %2 = tpu.matmul %0, %1, %cst {dimension_numbers = #tpu.dot_dimension_numbers<[1], [0], [0], [1], [0, 0, 1, 1], [], []>} : vector<12x100xbf16>, vector<100x32xbf16>, vector<12x32xf32> -> vector<12x32xf32>
    %c0_3 = arith.constant 0 : index
    %c0_4 = arith.constant 0 : index
    %3 = vector.load %arg3[%c0_3, %c0_4] : memref<12x1xf32, #tpu.memory_space<vmem>>, vector<12x1xf32>
    %4 = vector.broadcast %3 : vector<12x1xf32> to vector<12x32xf32>
    %5 = arith.addf %2, %4 : vector<12x32xf32>
    %c0_5 = arith.constant 0 : index
    %c0_6 = arith.constant 0 : index
    %6 = vector.load %arg4[%c0_5, %c0_6] : memref<3x32xf32, #tpu.memory_space<vmem>>, vector<3x32xf32>
    %7 = vector.extract_strided_slice %6 {offsets = [0, 0], sizes = [1, 32], strides = [1, 1]} : vector<3x32xf32> to vector<1x32xf32>
    %8 = vector.extract_strided_slice %5 {offsets = [0, 0], sizes = [4, 32], strides = [1, 1]} : vector<12x32xf32> to vector<4x32xf32>
    %9 = vector.broadcast %7 : vector<1x32xf32> to vector<4x32xf32>
    %10 = arith.mulf %9, %8 : vector<4x32xf32>
    %11 = vector.extract_strided_slice %6 {offsets = [1, 0], sizes = [1, 32], strides = [1, 1]} : vector<3x32xf32> to vector<1x32xf32>
    %12 = vector.extract_strided_slice %5 {offsets = [4, 0], sizes = [4, 32], strides = [1, 1]} : vector<12x32xf32> to vector<4x32xf32>
    %13 = vector.broadcast %11 : vector<1x32xf32> to vector<4x32xf32>
    %14 = arith.mulf %13, %12 : vector<4x32xf32>
    %15 = arith.addf %10, %14 : vector<4x32xf32>
    %16 = vector.extract_strided_slice %6 {offsets = [2, 0], sizes = [1, 32], strides = [1, 1]} : vector<3x32xf32> to vector<1x32xf32>
    %17 = vector.extract_strided_slice %5 {offsets = [8, 0], sizes = [4, 32], strides = [1, 1]} : vector<12x32xf32> to vector<4x32xf32>
    %18 = vector.broadcast %16 : vector<1x32xf32> to vector<4x32xf32>
    %19 = arith.mulf %18, %17 : vector<4x32xf32>
    %20 = arith.addf %15, %19 : vector<4x32xf32>
    %c0_7 = arith.constant 0 : index
    %c0_8 = arith.constant 0 : index
    %21 = vector.load %arg5[%c0_7, %c0_8] : memref<4x32xf32, #tpu.memory_space<vmem>>, vector<4x32xf32>
    %22 = arith.addf %20, %21 : vector<4x32xf32>
    %cst_9 = arith.constant 0.000000e+00 : f32
    %23 = vector.broadcast %cst_9 : f32 to vector<4x32xf32>
    %24 = arith.maximumf %22, %23 : vector<4x32xf32>
    %c0_10 = arith.constant 0 : index
    %c0_11 = arith.constant 0 : index
    %25 = vector.load %arg6[%c0_10, %c0_11] : memref<32x2xf32, #tpu.memory_space<vmem>>, vector<32x2xf32>
    %cst_12 = arith.constant dense<0.000000e+00> : vector<4x2xf32>
    %26 = tpu.matmul %24, %25, %cst_12 {dimension_numbers = #tpu.dot_dimension_numbers<[1], [0], [0], [1], [0, 0, 1, 1], [], []>} : vector<4x32xf32>, vector<32x2xf32>, vector<4x2xf32> -> vector<4x2xf32>
    %c0_13 = arith.constant 0 : index
    %c0_14 = arith.constant 0 : index
    %27 = vector.load %arg7[%c0_13, %c0_14] : memref<1x4xf32, #tpu.memory_space<vmem>>, vector<1x4xf32>
    %cst_15 = arith.constant dense<0.000000e+00> : vector<1x2xf32>
    %28 = tpu.matmul %27, %26, %cst_15 {dimension_numbers = #tpu.dot_dimension_numbers<[1], [0], [0], [1], [0, 0, 1, 1], [], []>} : vector<1x4xf32>, vector<4x2xf32>, vector<1x2xf32> -> vector<1x2xf32>
    %c0_16 = arith.constant 0 : index
    %c0_17 = arith.constant 0 : index
    %29 = vector.load %arg8[%c0_16, %c0_17] : memref<1x1xf32, #tpu.memory_space<vmem>>, vector<1x1xf32>
    %30 = vector.broadcast %29 : vector<1x1xf32> to vector<1x2xf32>
    %31 = arith.addf %28, %30 : vector<1x2xf32>
    %c0_18 = arith.constant 0 : index
    %c0_19 = arith.constant 0 : index
    %32 = vector.load %arg9[%c0_18, %c0_19] : memref<1x2xf32, #tpu.memory_space<vmem>>, vector<1x2xf32>
    tpu.vector_store %arg9[%c0_18, %c0_19], %31 {strides = array<i32>} : memref<1x2xf32, #tpu.memory_space<vmem>>, vector<1x2xf32>,
    return
  }
  func.func @transform_0(%arg0: i32) -> (i32, i32) {
    %c0_i32 = arith.constant 0 : i32
    %c0_i32_0 = arith.constant 0 : i32
    %c0_i32_1 = arith.constant 0 : i32
    return %c0_i32, %c0_i32_0 : i32, i32
  }
  func.func @transform_1(%arg0: i32) -> (i32, i32) {
    %c0_i32 = arith.constant 0 : i32
    %c0_i32_0 = arith.constant 0 : i32
    %c0_i32_1 = arith.constant 0 : i32
    return %c0_i32, %c0_i32_0 : i32, i32
  }
  func.func @transform_2(%arg0: i32) -> (i32, i32) {
    %c0_i32 = arith.constant 0 : i32
    %c0_i32_0 = arith.constant 0 : i32
    %c0_i32_1 = arith.constant 0 : i32
    return %c0_i32, %c0_i32_0 : i32, i32
  }
  func.func @transform_3(%arg0: i32) -> (i32, i32) {
    %c0_i32 = arith.constant 0 : i32
    %c0_i32_0 = arith.constant 0 : i32
    %c0_i32_1 = arith.constant 0 : i32
    return %c0_i32, %c0_i32_0 : i32, i32
  }
  func.func @transform_4(%arg0: i32) -> (i32, i32) {
    %c0_i32 = arith.constant 0 : i32
    %c0_i32_0 = arith.constant 0 : i32
    %c0_i32_1 = arith.constant 0 : i32
    return %c0_i32, %c0_i32_0 : i32, i32
  }
  func.func @transform_5(%arg0: i32) -> (i32, i32) {
    %c0_i32 = arith.constant 0 : i32
    %c0_i32_0 = arith.constant 0 : i32
    %c0_i32_1 = arith.constant 0 : i32
    return %c0_i32, %c0_i32_0 : i32, i32
  }
  func.func @transform_6(%arg0: i32) -> (i32, i32) {
    %c0_i32 = arith.constant 0 : i32
    %c0_i32_0 = arith.constant 0 : i32
    %c0_i32_1 = arith.constant 0 : i32
    return %c0_i32, %c0_i32_0 : i32, i32
  }
  func.func @transform_7(%arg0: i32) -> (i32, i32) {
    %c0_i32 = arith.constant 0 : i32
    %c0_i32_0 = arith.constant 0 : i32
    %c0_i32_1 = arith.constant 0 : i32
    return %c0_i32, %c0_i32_0 : i32, i32
  }
  func.func @transform_8(%arg0: i32) -> (i32, i32) {
    %c0_i32 = arith.constant 0 : i32
    %c0_i32_0 = arith.constant 0 : i32
    %c0_i32_1 = arith.constant 0 : i32
    return %c0_i32, %c0_i32_0 : i32, i32
  }
}

</mosaic_0001>

<llo_original>
// kernel: _forward.6
$region0: #{_forward.6}
  #allocation0 [shape = 'u32[]', space=smem, size = 0x4, offset = 0x4, fixed_abs, tag = 'smem constant byte address 0x4 - core index']
  #allocation1 [shape = 'u32[144,128]{1,0:T(1,128)}', space=vmem, size = 0x12000, scoped, tag = 'internal scratch']
  %s0 = inlined_call_operand.vmem [shape: bf16[75,512], index: 0, kind: input, shape index: {}]
  %s1 = inlined_call_operand.vmem [shape: bf16[12,75], index: 1, kind: input, shape index: {}]
  %s2 = inlined_call_operand.vmem [shape: f32[12,1], index: 2, kind: input, shape index: {}]
  %s3 = inlined_call_operand.vmem [shape: f32[3,512], index: 3, kind: input, shape index: {}]
  %s4 = inlined_call_operand.vmem [shape: f32[4,512], index: 4, kind: output, shape index: {}]
  %s5 = sld [smem:[#allocation0]]
  $region26: #{_forward.6} parent=0
    _
  %s7 = ssub.s32 1, %s5
  %s8 = scalar_select 0, %s7, %s5
  // Predicated region
  $region2: #{_forward.6} parent=0 // pred_check
    _
  $region3: #{_forward.6} parent=0 // pred_check_branch
    %10 = sbr.rel (0) target = $region5
  $region4: #{_forward.6} parent=0 // pred_region
    _
  $region5: #{_forward.6} parent=0 // pred_fallthru
    _
  // Predicated region
  $region6: #{_forward.6} parent=0 // pred_check
    _
  $region7: #{_forward.6} parent=0 // pred_check_branch
    %12 = sbr.rel (0) target = $region9
  $region8: #{_forward.6} parent=0 // pred_region
    _
  $region9: #{_forward.6} parent=0 // pred_fallthru
    _
  // Predicated region
  $region10: #{_forward.6} parent=0 // pred_check
    _
  $region11: #{_forward.6} parent=0 // pred_check_branch
    %14 = sbr.rel (0) target = $region13
  $region12: #{_forward.6} parent=0 // pred_region
    _
  $region13: #{_forward.6} parent=0 // pred_fallthru
    _
  // Predicated region
  $region14: #{_forward.6} parent=0 // pred_check
    _
  $region15: #{_forward.6} parent=0 // pred_check_branch
    %16 = sbr.rel (0) target = $region17
  $region16: #{_forward.6} parent=0 // pred_region
    _
  $region17: #{_forward.6} parent=0 // pred_fallthru
    _
  %v18 = vld [vmem:[%s1] sm:$0xf]
  %v19 = vld [vmem:[%s1 + $0x4] sm:$0x3]
  %v20 = vld [vmem:[%s0] sm:$0xff]
  %v21 = vld [vmem:[%s0 + $0x8] sm:$0xff]
  %v22 = vld [vmem:[%s0 + $0x10] sm:$0xff]
  %v23 = vld [vmem:[%s0 + $0x18] sm:$0xff]
  %v24 = vld [vmem:[%s0 + $0x20] sm:$0xff]
  %v25 = vld [vmem:[%s0 + $0x28] sm:$0xff]
  %v26 = vld [vmem:[%s0 + $0x30] sm:$0xff]
  %v27 = vld [vmem:[%s0 + $0x38] sm:$0xff]
  %v28 = vld [vmem:[%s0 + $0x40] sm:$0xff]
  %v29 = vld [vmem:[%s0 + $0x48] sm:$0xff]
  %v30 = vld [vmem:[%s0 + $0x50] sm:$0xff]
  %v31 = vld [vmem:[%s0 + $0x58] sm:$0xff]
  %v32 = vld [vmem:[%s0 + $0x60] sm:$0xff]
  %v33 = vld [vmem:[%s0 + $0x68] sm:$0xff]
  %v34 = vld [vmem:[%s0 + $0x70] sm:$0xff]
  %v35 = vld [vmem:[%s0 + $0x78] sm:$0xff]
  %v36 = vld [vmem:[%s0 + $0x80] sm:$0xff]
  %v37 = vld [vmem:[%s0 + $0x88] sm:$0xff]
  %v38 = vld [vmem:[%s0 + $0x90] sm:$0x33]
  %v39 = vld [vmem:[%s0 + $0x98] sm:$0x33]
  %v40 = vld [vmem:[%s2] sm:$0xff]
  %v41 = vld [vmem:[%s2 + $0x8] sm:$0xf]
  %43 = vset.pattern.permute.xlu0 0
  %44 = vperm.xlu0 %43, %v40
  %v45 = vpop.permute.xlu0 %44
  %48 = vset.pattern.permute.xlu0 0
  %49 = vperm.xlu0 %48, %v41
  %v50 = vpop.permute.xlu0 %49
  %v54 = vunpack.c.l.b16 %v18
  %v55 = vunpack.c.l.b16 %v19
  %v56 = vpack.c.b16 %v55, %v54
  %v77 = vunpack.c.l.b16 %v20
  %v78 = vunpack.c.h.b16 %v20
  %v79 = vunpack.c.l.b16 %v21
  %v80 = vunpack.c.h.b16 %v21
  %v81 = vunpack.c.l.b16 %v22
  %v82 = vunpack.c.h.b16 %v22
  %v83 = vunpack.c.l.b16 %v23
  %v84 = vunpack.c.h.b16 %v23
  %v85 = vunpack.c.l.b16 %v24
  %v86 = vunpack.c.h.b16 %v24
  %v87 = vunpack.c.l.b16 %v25
  %v88 = vunpack.c.h.b16 %v25
  %v89 = vunpack.c.l.b16 %v26
  %v90 = vunpack.c.h.b16 %v26
  %v91 = vunpack.c.l.b16 %v27
  %v92 = vunpack.c.h.b16 %v27
  %v93 = vunpack.c.l.b16 %v28
  %v94 = vunpack.c.h.b16 %v28
  %v95 = vunpack.c.l.b16 %v29
  %v96 = vunpack.c.h.b16 %v29
  %v97 = vunpack.c.l.b16 %v30
  %v98 = vunpack.c.h.b16 %v30
  %v99 = vunpack.c.l.b16 %v31
  %v100 = vunpack.c.h.b16 %v31
  %v101 = vunpack.c.l.b16 %v32
  %v102 = vunpack.c.h.b16 %v32
  %v103 = vunpack.c.l.b16 %v33
  %v104 = vunpack.c.h.b16 %v33
  %v105 = vunpack.c.l.b16 %v34
  %v106 = vunpack.c.h.b16 %v34
  %v107 = vunpack.c.l.b16 %v35
  %v108 = vunpack.c.h.b16 %v35
  %v109 = vunpack.c.l.b16 %v36
  %v110 = vunpack.c.h.b16 %v36
  %v111 = vunpack.c.l.b16 %v37
  %v112 = vunpack.c.h.b16 %v37
  %v113 = vunpack.c.l.b16 %v38
  %v114 = vunpack.c.h.b16 %v38
  %v115 = vunpack.c.l.b16 %v39
  %v116 = vunpack.c.h.b16 %v39
  %v117 = vpack.c.b16 %v81, %v77
  %v118 = vpack.c.b16 %v82, %v78
  %v119 = vpack.c.b16 %v83, %v79
  %v120 = vpack.c.b16 %v84, %v80
  %v121 = vpack.c.b16 %v89, %v85
  %v122 = vpack.c.b16 %v90, %v86
  %v123 = vpack.c.b16 %v91, %v87
  %v124 = vpack.c.b16 %v92, %v88
  %v125 = vpack.c.b16 %v97, %v93
  %v126 = vpack.c.b16 %v98, %v94
  %v127 = vpack.c.b16 %v99, %v95
  %v128 = vpack.c.b16 %v100, %v96
  %v129 = vpack.c.b16 %v105, %v101
  %v130 = vpack.c.b16 %v106, %v102
  %v131 = vpack.c.b16 %v107, %v103
  %v132 = vpack.c.b16 %v108, %v104
  %v133 = vpack.c.b16 %v113, %v109
  %v134 = vpack.c.b16 %v114, %v110
  %v135 = vpack.c.b16 %v115, %v111
  %v136 = vpack.c.b16 %v116, %v112
  %vm153 = vcmask 613376
  %v155 = vsel %vm153, %v56, 0
  %vm157 = vcmask 1044480
  %vm158 = vcmask 1045504
  %v159 = vsel %vm157, 4294967295, 65535
  %v160 = vsel %vm158, %v159, 0
  %v162 = vand.u32 %v133, %v160
  %v165 = vand.u32 %v134, %v160
  %v168 = vand.u32 %v135, %v160
  %v171 = vand.u32 %v136, %v160
  %173 = vmatprep.subr.bf16.mxu0 0
  %174 = vmatpush1.bf16.msra.mxu0 0
  %175 = vmatprep.subr.bf16.mxu0 0
  %176 = vmatpush1.bf16.msra.mxu0 0
  %177 = vmatprep.subr.bf16.mxu0 0
  %178 = vmatpush1.bf16.msra.mxu0 0
  %179 = vmatprep.subr.bf16.mxu0 %v165
  %180 = vmatpush1.bf16.msra.mxu0 %v162
  %181 = vmatprep.subr.bf16.mxu0 %v130
  %182 = vmatpush1.bf16.msra.mxu0 %v129
  %183 = vmatprep.subr.bf16.mxu0 %v126
  %184 = vmatpush1.bf16.msra.mxu0 %v125
  %185 = vmatprep.subr.bf16.mxu0 %v122
  %186 = vmatpush1.bf16.msra.mxu0 %v121
  %187 = vmatprep.subr.bf16.mxu0 %v118
  %188 = vmatpush1.bf16.msra.mxu0 %v117
  %189 = vmatprep.subr.bf16.mxu0 0
  %190 = vmatpush2.bf16.msra.mxu0 0
  %191 = vmatprep.subr.bf16.mxu0 0
  %192 = vmatpush2.bf16.msra.mxu0 0
  %193 = vmatprep.subr.bf16.mxu0 0
  %194 = vmatpush2.bf16.msra.mxu0 0
  %195 = vmatprep.subr.bf16.mxu0 0
  %196 = vmatpush2.bf16.msra.mxu0 0
  %197 = vmatprep.subr.bf16.mxu0 0
  %198 = vmatpush2.bf16.msra.mxu0 0
  %199 = vmatprep.subr.bf16.mxu0 0
  %200 = vmatpush2.bf16.msra.mxu0 0
  %201 = vmatprep.subr.bf16.mxu0 0
  %202 = vmatpush2.bf16.msra.mxu0 0
  %203 = vmatprep.subr.bf16.mxu0 0
  %204 = vmatpush2.bf16.msra.mxu0 0
  %205 = vmatprep.mubr.bf16.mxu0 0
  %206 = vmatmul.mubr.bf16.gmra.mxu0 %v155
  %v207 = vpop.f32.mrf.mxu0
  %v208 = vadd.f32 %v45, %v207
  %v209 = vpop.f32.mrf.mxu0
  %v210 = vadd.f32 %v45, %v209
  %v211 = vpop.f32.mrf.mxu0
  %v212 = vadd.f32 %v50, %v211
  %v213 = vpop.f32.mrf.mxu0
  %v214 = vadd.f32 %v50, %v213
  %215 = vdwg.mxu0
  %216 = vmatprep.subr.bf16.mxu0 0
  %217 = vmatpush1.bf16.msra.mxu0 0
  %218 = vmatprep.subr.bf16.mxu0 0
  %219 = vmatpush1.bf16.msra.mxu0 0
  %220 = vmatprep.subr.bf16.mxu0 0
  %221 = vmatpush1.bf16.msra.mxu0 0
  %222 = vmatprep.subr.bf16.mxu0 %v171
  %223 = vmatpush1.bf16.msra.mxu0 %v168
  %224 = vmatprep.subr.bf16.mxu0 %v132
  %225 = vmatpush1.bf16.msra.mxu0 %v131
  %226 = vmatprep.subr.bf16.mxu0 %v128
  %227 = vmatpush1.bf16.msra.mxu0 %v127
  %228 = vmatprep.subr.bf16.mxu0 %v124
  %229 = vmatpush1.bf16.msra.mxu0 %v123
  %230 = vmatprep.subr.bf16.mxu0 %v120
  %231 = vmatpush1.bf16.msra.mxu0 %v119
  %232 = vmatprep.subr.bf16.mxu0 0
  %233 = vmatpush2.bf16.msra.mxu0 0
  %234 = vmatprep.subr.bf16.mxu0 0
  %235 = vmatpush2.bf16.msra.mxu0 0
  %236 = vmatprep.subr.bf16.mxu0 0
  %237 = vmatpush2.bf16.msra.mxu0 0
  %238 = vmatprep.subr.bf16.mxu0 0
  %239 = vmatpush2.bf16.msra.mxu0 0
  %240 = vmatprep.subr.bf16.mxu0 0
  %241 = vmatpush2.bf16.msra.mxu0 0
  %242 = vmatprep.subr.bf16.mxu0 0
  %243 = vmatpush2.bf16.msra.mxu0 0
  %244 = vmatprep.subr.bf16.mxu0 0
  %245 = vmatpush2.bf16.msra.mxu0 0
  %246 = vmatprep.subr.bf16.mxu0 0
  %247 = vmatpush2.bf16.msra.mxu0 0
  %248 = vmatprep.mubr.bf16.mxu0 0
  %249 = vmatmul.mubr.bf16.gmra.mxu0 %v155
  %v250 = vpop.f32.mrf.mxu0
  %v251 = vadd.f32 %v45, %v250
  %v252 = vpop.f32.mrf.mxu0
  %v253 = vadd.f32 %v45, %v252
  %v254 = vpop.f32.mrf.mxu0
  %v255 = vadd.f32 %v50, %v254
  %v256 = vpop.f32.mrf.mxu0
  %v257 = vadd.f32 %v50, %v256
  %258 = vdwg.mxu0
  %v259 = vld [vmem:[%s3] sm:$0x77]
  %v260 = vld [vmem:[%s3 + $0x8] sm:$0x77]
  %v263 = vlaneseq
  %v264 = vshrl.u32 %v263, 7
  %v265 = vsub.s32 0, %v264
  %v266 = vrot.slane %v259, %v265
  %v267 = vlaneseq
  %v268 = vshrl.u32 %v267, 7
  %v269 = vsub.s32 4, %v268
  %v270 = vrot.slane %v259, %v269
  %v271 = vlaneseq
  %v272 = vshrl.u32 %v271, 7
  %v273 = vsub.s32 0, %v272
  %v274 = vrot.slane %v260, %v273
  %v275 = vlaneseq
  %v276 = vshrl.u32 %v275, 7
  %v277 = vsub.s32 4, %v276
  %v278 = vrot.slane %v260, %v277
  %v283 = vlaneseq
  %v284 = vshrl.u32 %v283, 7
  %v285 = vsub.s32 0, %v284
  %v286 = vrot.slane %v266, %v285
  %v287 = vlaneseq
  %v288 = vshrl.u32 %v287, 7
  %v289 = vsub.s32 0, %v288
  %v290 = vrot.slane %v270, %v289
  %v291 = vlaneseq
  %v292 = vshrl.u32 %v291, 7
  %v293 = vsub.s32 0, %v292
  %v294 = vrot.slane %v274, %v293
  %v295 = vlaneseq
  %v296 = vshrl.u32 %v295, 7
  %v297 = vsub.s32 0, %v296
  %v298 = vrot.slane %v278, %v297
  %v299 = vmul.f32 %v286, %v208
  %v300 = vmul.f32 %v290, %v210
  %v301 = vmul.f32 %v294, %v251
  %v302 = vmul.f32 %v298, %v253
  %v303 = vlaneseq
  %v304 = vshrl.u32 %v303, 7
  %v305 = vsub.s32 1, %v304
  %v306 = vrot.slane %v259, %v305
  %v307 = vlaneseq
  %v308 = vshrl.u32 %v307, 7
  %v309 = vsub.s32 5, %v308
  %v310 = vrot.slane %v259, %v309
  %v311 = vlaneseq
  %v312 = vshrl.u32 %v311, 7
  %v313 = vsub.s32 1, %v312
  %v314 = vrot.slane %v260, %v313
  %v315 = vlaneseq
  %v316 = vshrl.u32 %v315, 7
  %v317 = vsub.s32 5, %v316
  %v318 = vrot.slane %v260, %v317
  %v323 = vlaneseq
  %v324 = vshrl.u32 %v323, 7
  %v325 = vsub.s32 1, %v324
  %v326 = vrot.slane %v306, %v325
  %v327 = vlaneseq
  %v328 = vshrl.u32 %v327, 7
  %v329 = vsub.s32 1, %v328
  %v330 = vrot.slane %v310, %v329
  %v331 = vlaneseq
  %v332 = vshrl.u32 %v331, 7
  %v333 = vsub.s32 1, %v332
  %v334 = vrot.slane %v314, %v333
  %v335 = vlaneseq
  %v336 = vshrl.u32 %v335, 7
  %v337 = vsub.s32 1, %v336
  %v338 = vrot.slane %v318, %v337
  %v339 = vmul.f32 %v326, %v208
  %v340 = vmul.f32 %v330, %v210
  %v341 = vmul.f32 %v334, %v251
  %v342 = vmul.f32 %v338, %v253
  %v347 = vrot.slane %v339, 4
  %v348 = vrot.slane %v340, 4
  %v349 = vrot.slane %v341, 4
  %v350 = vrot.slane %v342, 4
  %v355 = vadd.f32 %v299, %v347
  %v356 = vadd.f32 %v300, %v348
  %v357 = vadd.f32 %v301, %v349
  %v358 = vadd.f32 %v302, %v350
  %v359 = vlaneseq
  %v360 = vshrl.u32 %v359, 7
  %v361 = vsub.s32 2, %v360
  %v362 = vrot.slane %v259, %v361
  %v363 = vlaneseq
  %v364 = vshrl.u32 %v363, 7
  %v365 = vsub.s32 6, %v364
  %v366 = vrot.slane %v259, %v365
  %v367 = vlaneseq
  %v368 = vshrl.u32 %v367, 7
  %v369 = vsub.s32 2, %v368
  %v370 = vrot.slane %v260, %v369
  %v371 = vlaneseq
  %v372 = vshrl.u32 %v371, 7
  %v373 = vsub.s32 6, %v372
  %v374 = vrot.slane %v260, %v373
  %v379 = vlaneseq
  %v380 = vshrl.u32 %v379, 7
  %v381 = vsub.s32 2, %v380
  %v382 = vrot.slane %v362, %v381
  %v383 = vlaneseq
  %v384 = vshrl.u32 %v383, 7
  %v385 = vsub.s32 2, %v384
  %v386 = vrot.slane %v366, %v385
  %v387 = vlaneseq
  %v388 = vshrl.u32 %v387, 7
  %v389 = vsub.s32 2, %v388
  %v390 = vrot.slane %v370, %v389
  %v391 = vlaneseq
  %v392 = vshrl.u32 %v391, 7
  %v393 = vsub.s32 2, %v392
  %v394 = vrot.slane %v374, %v393
  %v395 = vmul.f32 %v382, %v212
  %v396 = vmul.f32 %v386, %v214
  %v397 = vmul.f32 %v390, %v255
  %v398 = vmul.f32 %v394, %v257
  %v399 = vadd.f32 %v355, %v395
  %v400 = vadd.f32 %v356, %v396
  %v401 = vadd.f32 %v357, %v397
  %v402 = vadd.f32 %v358, %v398
  %v407 = vcombine.low %v399, %v400
  %v408 = vcombine.low %v401, %v402
  %411 = vst [vmem:[%s4] sm:$0xff] %v407
  %412 = vst [vmem:[%s4 + $0x8] sm:$0xff] %v408
  // Predicated region
  $region18: #{_forward.6} parent=0 // pred_check
    _
  $region19: #{_forward.6} parent=0 // pred_check_branch
    %414 = sbr.rel (0) target = $region21
  $region20: #{_forward.6} parent=0 // pred_region
    _
  $region21: #{_forward.6} parent=0 // pred_fallthru
    _
  // Predicated region
  $region22: #{_forward.6} parent=0 // pred_check
    _
  $region23: #{_forward.6} parent=0 // pred_check_branch
    %416 = sbr.rel (0) target = $region25
  $region24: #{_forward.6} parent=0 // pred_region
    _
  $region25: #{_forward.6} parent=0 // pred_fallthru
    _

// kernel: _forward.7
$region0: #{_forward.7}
  #allocation0 [shape = 'u32[]', space=smem, size = 0x4, offset = 0x4, fixed_abs, tag = 'smem constant byte address 0x4 - core index']
  #allocation1 [shape = 'u32[144,128]{1,0:T(1,128)}', space=vmem, size = 0x12000, scoped, tag = 'internal scratch']
  %s0 = inlined_call_operand.vmem [shape: bf16[100,128], index: 0, kind: input, shape index: {}]
  %s1 = inlined_call_operand.vmem [shape: bf16[12,100], index: 1, kind: input, shape index: {}]
  %s2 = inlined_call_operand.vmem [shape: f32[12,1], index: 2, kind: input, shape index: {}]
  %s3 = inlined_call_operand.vmem [shape: f32[3,128], index: 3, kind: input, shape index: {}]
  %s4 = inlined_call_operand.vmem [shape: bf16[3,128], index: 4, kind: input, shape index: {}]
  %s5 = inlined_call_operand.vmem [shape: bf16[4,3], index: 5, kind: input, shape index: {}]
  %s6 = inlined_call_operand.vmem [shape: f32[4,1], index: 6, kind: input, shape index: {}]
  %s7 = inlined_call_operand.vmem [shape: f32[4,128], index: 7, kind: output, shape index: {}]
  %s8 = sld [smem:[#allocation0]]
  $region38: #{_forward.7} parent=0
    _
  %s10 = ssub.s32 1, %s8
  %s11 = scalar_select 0, %s10, %s8
  // Predicated region
  $region2: #{_forward.7} parent=0 // pred_check
    _
  $region3: #{_forward.7} parent=0 // pred_check_branch
    %13 = sbr.rel (0) target = $region5
  $region4: #{_forward.7} parent=0 // pred_region
    _
  $region5: #{_forward.7} parent=0 // pred_fallthru
    _
  // Predicated region
  $region6: #{_forward.7} parent=0 // pred_check
    _
  $region7: #{_forward.7} parent=0 // pred_check_branch
    %15 = sbr.rel (0) target = $region9
  $region8: #{_forward.7} parent=0 // pred_region
    _
  $region9: #{_forward.7} parent=0 // pred_fallthru
    _
  // Predicated region
  $region10: #{_forward.7} parent=0 // pred_check
    _
  $region11: #{_forward.7} parent=0 // pred_check_branch
    %17 = sbr.rel (0) target = $region13
  $region12: #{_forward.7} parent=0 // pred_region
    _
  $region13: #{_forward.7} parent=0 // pred_fallthru
    _
  // Predicated region
  $region14: #{_forward.7} parent=0 // pred_check
    _
  $region15: #{_forward.7} parent=0 // pred_check_branch
    %19 = sbr.rel (0) target = $region17
  $region16: #{_forward.7} parent=0 // pred_region
    _
  $region17: #{_forward.7} parent=0 // pred_fallthru
    _
  // Predicated region
  $region18: #{_forward.7} parent=0 // pred_check
    _
  $region19: #{_forward.7} parent=0 // pred_check_branch
    %21 = sbr.rel (0) target = $region21
  $region20: #{_forward.7} parent=0 // pred_region
    _
  $region21: #{_forward.7} parent=0 // pred_fallthru
    _
  // Predicated region
  $region22: #{_forward.7} parent=0 // pred_check
    _
  $region23: #{_forward.7} parent=0 // pred_check_branch
    %23 = sbr.rel (0) target = $region25
  $region24: #{_forward.7} parent=0 // pred_region
    _
  $region25: #{_forward.7} parent=0 // pred_fallthru
    _
  // Predicated region
  $region26: #{_forward.7} parent=0 // pred_check
    _
  $region27: #{_forward.7} parent=0 // pred_check_branch
    %25 = sbr.rel (0) target = $region29
  $region28: #{_forward.7} parent=0 // pred_region
    _
  $region29: #{_forward.7} parent=0 // pred_fallthru
    _
  %v27 = vld [vmem:[%s1] sm:$0xf]
  %v28 = vld [vmem:[%s1 + $0x4] sm:$0x3]
  %v29 = vld [vmem:[%s0] sm:$0xf]
  %v30 = vld [vmem:[%s0 + $0x4] sm:$0xf]
  %v31 = vld [vmem:[%s0 + $0x8] sm:$0xf]
  %v32 = vld [vmem:[%s0 + $0xc] sm:$0xf]
  %v33 = vld [vmem:[%s0 + $0x10] sm:$0xf]
  %v34 = vld [vmem:[%s0 + $0x14] sm:$0xf]
  %v35 = vld [vmem:[%s0 + $0x18] sm:$0xf]
  %v36 = vld [vmem:[%s0 + $0x1c] sm:$0xf]
  %v37 = vld [vmem:[%s0 + $0x20] sm:$0xf]
  %v38 = vld [vmem:[%s0 + $0x24] sm:$0xf]
  %v39 = vld [vmem:[%s0 + $0x28] sm:$0xf]
  %v40 = vld [vmem:[%s0 + $0x2c] sm:$0xf]
  %v41 = vld [vmem:[%s0 + $0x30] sm:$0x3]
  %v42 = vld [vmem:[%s2] sm:$0xff]
  %v43 = vld [vmem:[%s2 + $0x8] sm:$0xf]
  %45 = vset.pattern.permute.xlu0 0
  %46 = vperm.xlu0 %45, %v42
  %v47 = vpop.permute.xlu0 %46
  %50 = vset.pattern.permute.xlu0 0
  %51 = vperm.xlu0 %50, %v43
  %v52 = vpop.permute.xlu0 %51
  %v56 = vunpack.c.l.b16 %v27
  %v57 = vunpack.c.l.b16 %v28
  %v58 = vpack.c.b16 %v57, %v56
  %v72 = vunpack.c.l.b16 %v29
  %v73 = vunpack.c.l.b16 %v30
  %v74 = vunpack.c.l.b16 %v31
  %v75 = vunpack.c.l.b16 %v32
  %v76 = vunpack.c.l.b16 %v33
  %v77 = vunpack.c.l.b16 %v34
  %v78 = vunpack.c.l.b16 %v35
  %v79 = vunpack.c.l.b16 %v36
  %v80 = vunpack.c.l.b16 %v37
  %v81 = vunpack.c.l.b16 %v38
  %v82 = vunpack.c.l.b16 %v39
  %v83 = vunpack.c.l.b16 %v40
  %v84 = vunpack.c.l.b16 %v41
  %v85 = vpack.c.b16 %v73, %v72
  %v86 = vpack.c.b16 %v75, %v74
  %v87 = vpack.c.b16 %v77, %v76
  %v88 = vpack.c.b16 %v79, %v78
  %v89 = vpack.c.b16 %v81, %v80
  %v90 = vpack.c.b16 %v83, %v82
  %v91 = vpack.c.b16 %v84, %v84
  %vm98 = vcmask 818176
  %v100 = vsel %vm98, %v58, 0
  %vm102 = vcmask 1041408
  %v104 = vsel %vm102, %v91, 0
  %106 = vmatprep.subr.bf16.mxu0 0
  %107 = vmatpush1.bf16.msra.mxu0 0
  %108 = vmatprep.subr.bf16.mxu0 0
  %109 = vmatpush1.bf16.msra.mxu0 %v104
  %110 = vmatprep.subr.bf16.mxu0 0
  %111 = vmatpush1.bf16.msra.mxu0 %v90
  %112 = vmatprep.subr.bf16.mxu0 0
  %113 = vmatpush1.bf16.msra.mxu0 %v89
  %114 = vmatprep.subr.bf16.mxu0 0
  %115 = vmatpush1.bf16.msra.mxu0 %v88
  %116 = vmatprep.subr.bf16.mxu0 0
  %117 = vmatpush1.bf16.msra.mxu0 %v87
  %118 = vmatprep.subr.bf16.mxu0 0
  %119 = vmatpush1.bf16.msra.mxu0 %v86
  %120 = vmatprep.subr.bf16.mxu0 0
  %121 = vmatpush1.bf16.msra.mxu0 %v85
  %122 = vmatprep.subr.bf16.mxu0 0
  %123 = vmatpush2.bf16.msra.mxu0 0
  %124 = vmatprep.subr.bf16.mxu0 0
  %125 = vmatpush2.bf16.msra.mxu0 0
  %126 = vmatprep.subr.bf16.mxu0 0
  %127 = vmatpush2.bf16.msra.mxu0 0
  %128 = vmatprep.subr.bf16.mxu0 0
  %129 = vmatpush2.bf16.msra.mxu0 0
  %130 = vmatprep.subr.bf16.mxu0 0
  %131 = vmatpush2.bf16.msra.mxu0 0
  %132 = vmatprep.subr.bf16.mxu0 0
  %133 = vmatpush2.bf16.msra.mxu0 0
  %134 = vmatprep.subr.bf16.mxu0 0
  %135 = vmatpush2.bf16.msra.mxu0 0
  %136 = vmatprep.subr.bf16.mxu0 0
  %137 = vmatpush2.bf16.msra.mxu0 0
  %138 = vmatprep.mubr.bf16.mxu0 0
  %139 = vmatmul.mubr.bf16.gmra.mxu0 %v100
  %v140 = vpop.f32.mrf.mxu0
  %v141 = vadd.f32 %v47, %v140
  %v142 = vpop.f32.mrf.mxu0
  %v143 = vpop.f32.mrf.mxu0
  %v144 = vadd.f32 %v52, %v143
  %v145 = vpop.f32.mrf.mxu0
  %146 = vdwg.mxu0
  %v147 = vld [vmem:[%s3] sm:$0x7]
  %v148 = vlaneseq
  %v149 = vshrl.u32 %v148, 7
  %v150 = vsub.s32 0, %v149
  %v151 = vrot.slane %v147, %v150
  %v152 = vmul.f32 %v151, %v141
  %v153 = vlaneseq
  %v154 = vshrl.u32 %v153, 7
  %v155 = vsub.s32 1, %v154
  %v156 = vrot.slane %v147, %v155
  %v157 = vmul.f32 %v156, %v141
  %v159 = vrot.slane %v157, 4
  %v161 = vadd.f32 %v152, %v159
  %v162 = vlaneseq
  %v163 = vshrl.u32 %v162, 7
  %v164 = vsub.s32 2, %v163
  %v165 = vrot.slane %v147, %v164
  %v166 = vmul.f32 %v165, %v144
  %v167 = vadd.f32 %v161, %v166
  %v168 = vld [vmem:[%s5] sm:$0x3]
  %v169 = vld [vmem:[%s4] sm:$0x3]
  %v170 = vld [vmem:[%s6] sm:$0xf]
  %172 = vset.pattern.permute.xlu0 0
  %173 = vperm.xlu0 %172, %v170
  %v174 = vpop.permute.xlu0 %173
  %vm176 = vcmask 23552
  %v178 = vsel %vm176, %v168, 0
  %vm180 = vcmask 1040384
  %v181 = vsel %vm180, 4294967295, 65535
  %v182 = vsel %vm102, %v181, 0
  %v184 = vand.u32 %v169, %v182
  %186 = vmatprep.subr.bf16.mxu0 0
  %187 = vmatpush1.bf16.msra.mxu0 0
  %188 = vmatprep.subr.bf16.mxu0 0
  %189 = vmatpush1.bf16.msra.mxu0 0
  %190 = vmatprep.subr.bf16.mxu0 0
  %191 = vmatpush1.bf16.msra.mxu0 0
  %192 = vmatprep.subr.bf16.mxu0 0
  %193 = vmatpush1.bf16.msra.mxu0 0
  %194 = vmatprep.subr.bf16.mxu0 0
  %195 = vmatpush1.bf16.msra.mxu0 0
  %196 = vmatprep.subr.bf16.mxu0 0
  %197 = vmatpush1.bf16.msra.mxu0 0
  %198 = vmatprep.subr.bf16.mxu0 0
  %199 = vmatpush1.bf16.msra.mxu0 0
  %200 = vmatprep.subr.bf16.mxu0 0
  %201 = vmatpush1.bf16.msra.mxu0 %v184
  %202 = vmatprep.subr.bf16.mxu0 0
  %203 = vmatpush2.bf16.msra.mxu0 0
  %204 = vmatprep.subr.bf16.mxu0 0
  %205 = vmatpush2.bf16.msra.mxu0 0
  %206 = vmatprep.subr.bf16.mxu0 0
  %207 = vmatpush2.bf16.msra.mxu0 0
  %208 = vmatprep.subr.bf16.mxu0 0
  %209 = vmatpush2.bf16.msra.mxu0 0
  %210 = vmatprep.subr.bf16.mxu0 0
  %211 = vmatpush2.bf16.msra.mxu0 0
  %212 = vmatprep.subr.bf16.mxu0 0
  %213 = vmatpush2.bf16.msra.mxu0 0
  %214 = vmatprep.subr.bf16.mxu0 0
  %215 = vmatpush2.bf16.msra.mxu0 0
  %216 = vmatprep.subr.bf16.mxu0 0
  %217 = vmatpush2.bf16.msra.mxu0 0
  %218 = vmatprep.mubr.bf16.mxu0 0
  %219 = vmatmul.mubr.bf16.gmra.mxu0 %v178
  %v220 = vpop.f32.mrf.mxu0
  %v221 = vadd.f32 %v174, %v220
  %v222 = vpop.f32.mrf.mxu0
  %v223 = vpop.f32.mrf.mxu0
  %v224 = vpop.f32.mrf.mxu0
  %225 = vdwg.mxu0
  %v226 = vadd.f32 %v167, %v221
  %227 = vst [vmem:[%s7] sm:$0xf] %v226
  // Predicated region
  $region30: #{_forward.7} parent=0 // pred_check
    _
  $region31: #{_forward.7} parent=0 // pred_check_branch
    %229 = sbr.rel (0) target = $region33
  $region32: #{_forward.7} parent=0 // pred_region
    _
  $region33: #{_forward.7} parent=0 // pred_fallthru
    _
  // Predicated region
  $region34: #{_forward.7} parent=0 // pred_check
    _
  $region35: #{_forward.7} parent=0 // pred_check_branch
    %231 = sbr.rel (0) target = $region37
  $region36: #{_forward.7} parent=0 // pred_region
    _
  $region37: #{_forward.7} parent=0 // pred_fallthru
    _

// kernel: _forward.8
$region0: #{_forward.8}
  #allocation0 [shape = 'u32[]', space=smem, size = 0x4, offset = 0x4, fixed_abs, tag = 'smem constant byte address 0x4 - core index']
  #allocation1 [shape = 'u32[144,128]{1,0:T(1,128)}', space=vmem, size = 0x12000, scoped, tag = 'internal scratch']
  %s0 = inlined_call_operand.vmem [shape: bf16[100,128], index: 0, kind: input, shape index: {}]
  %s1 = inlined_call_operand.vmem [shape: bf16[12,100], index: 1, kind: input, shape index: {}]
  %s2 = inlined_call_operand.vmem [shape: f32[12,1], index: 2, kind: input, shape index: {}]
  %s3 = inlined_call_operand.vmem [shape: f32[3,128], index: 3, kind: input, shape index: {}]
  %s4 = inlined_call_operand.vmem [shape: f32[4,128], index: 4, kind: output, shape index: {}]
  %s5 = sld [smem:[#allocation0]]
  $region26: #{_forward.8} parent=0
    _
  %s7 = ssub.s32 1, %s5
  %s8 = scalar_select 0, %s7, %s5
  // Predicated region
  $region2: #{_forward.8} parent=0 // pred_check
    _
  $region3: #{_forward.8} parent=0 // pred_check_branch
    %10 = sbr.rel (0) target = $region5
  $region4: #{_forward.8} parent=0 // pred_region
    _
  $region5: #{_forward.8} parent=0 // pred_fallthru
    _
  // Predicated region
  $region6: #{_forward.8} parent=0 // pred_check
    _
  $region7: #{_forward.8} parent=0 // pred_check_branch
    %12 = sbr.rel (0) target = $region9
  $region8: #{_forward.8} parent=0 // pred_region
    _
  $region9: #{_forward.8} parent=0 // pred_fallthru
    _
  // Predicated region
  $region10: #{_forward.8} parent=0 // pred_check
    _
  $region11: #{_forward.8} parent=0 // pred_check_branch
    %14 = sbr.rel (0) target = $region13
  $region12: #{_forward.8} parent=0 // pred_region
    _
  $region13: #{_forward.8} parent=0 // pred_fallthru
    _
  // Predicated region
  $region14: #{_forward.8} parent=0 // pred_check
    _
  $region15: #{_forward.8} parent=0 // pred_check_branch
    %16 = sbr.rel (0) target = $region17
  $region16: #{_forward.8} parent=0 // pred_region
    _
  $region17: #{_forward.8} parent=0 // pred_fallthru
    _
  %v18 = vld [vmem:[%s1] sm:$0xf]
  %v19 = vld [vmem:[%s1 + $0x4] sm:$0x3]
  %v20 = vld [vmem:[%s0] sm:$0xf]
  %v21 = vld [vmem:[%s0 + $0x4] sm:$0xf]
  %v22 = vld [vmem:[%s0 + $0x8] sm:$0xf]
  %v23 = vld [vmem:[%s0 + $0xc] sm:$0xf]
  %v24 = vld [vmem:[%s0 + $0x10] sm:$0xf]
  %v25 = vld [vmem:[%s0 + $0x14] sm:$0xf]
  %v26 = vld [vmem:[%s0 + $0x18] sm:$0xf]
  %v27 = vld [vmem:[%s0 + $0x1c] sm:$0xf]
  %v28 = vld [vmem:[%s0 + $0x20] sm:$0xf]
  %v29 = vld [vmem:[%s0 + $0x24] sm:$0xf]
  %v30 = vld [vmem:[%s0 + $0x28] sm:$0xf]
  %v31 = vld [vmem:[%s0 + $0x2c] sm:$0xf]
  %v32 = vld [vmem:[%s0 + $0x30] sm:$0x3]
  %v33 = vld [vmem:[%s2] sm:$0xff]
  %v34 = vld [vmem:[%s2 + $0x8] sm:$0xf]
  %36 = vset.pattern.permute.xlu0 0
  %37 = vperm.xlu0 %36, %v33
  %v38 = vpop.permute.xlu0 %37
  %41 = vset.pattern.permute.xlu0 0
  %42 = vperm.xlu0 %41, %v34
  %v43 = vpop.permute.xlu0 %42
  %v47 = vunpack.c.l.b16 %v18
  %v48 = vunpack.c.l.b16 %v19
  %v49 = vpack.c.b16 %v48, %v47
  %v63 = vunpack.c.l.b16 %v20
  %v64 = vunpack.c.l.b16 %v21
  %v65 = vunpack.c.l.b16 %v22
  %v66 = vunpack.c.l.b16 %v23
  %v67 = vunpack.c.l.b16 %v24
  %v68 = vunpack.c.l.b16 %v25
  %v69 = vunpack.c.l.b16 %v26
  %v70 = vunpack.c.l.b16 %v27
  %v71 = vunpack.c.l.b16 %v28
  %v72 = vunpack.c.l.b16 %v29
  %v73 = vunpack.c.l.b16 %v30
  %v74 = vunpack.c.l.b16 %v31
  %v75 = vunpack.c.l.b16 %v32
  %v76 = vpack.c.b16 %v64, %v63
  %v77 = vpack.c.b16 %v66, %v65
  %v78 = vpack.c.b16 %v68, %v67
  %v79 = vpack.c.b16 %v70, %v69
  %v80 = vpack.c.b16 %v72, %v71
  %v81 = vpack.c.b16 %v74, %v73
  %v82 = vpack.c.b16 %v75, %v75
  %vm89 = vcmask 818176
  %v91 = vsel %vm89, %v49, 0
  %vm93 = vcmask 1041408
  %v95 = vsel %vm93, %v82, 0
  %97 = vmatprep.subr.bf16.mxu0 0
  %98 = vmatpush1.bf16.msra.mxu0 0
  %99 = vmatprep.subr.bf16.mxu0 0
  %100 = vmatpush1.bf16.msra.mxu0 %v95
  %101 = vmatprep.subr.bf16.mxu0 0
  %102 = vmatpush1.bf16.msra.mxu0 %v81
  %103 = vmatprep.subr.bf16.mxu0 0
  %104 = vmatpush1.bf16.msra.mxu0 %v80
  %105 = vmatprep.subr.bf16.mxu0 0
  %106 = vmatpush1.bf16.msra.mxu0 %v79
  %107 = vmatprep.subr.bf16.mxu0 0
  %108 = vmatpush1.bf16.msra.mxu0 %v78
  %109 = vmatprep.subr.bf16.mxu0 0
  %110 = vmatpush1.bf16.msra.mxu0 %v77
  %111 = vmatprep.subr.bf16.mxu0 0
  %112 = vmatpush1.bf16.msra.mxu0 %v76
  %113 = vmatprep.subr.bf16.mxu0 0
  %114 = vmatpush2.bf16.msra.mxu0 0
  %115 = vmatprep.subr.bf16.mxu0 0
  %116 = vmatpush2.bf16.msra.mxu0 0
  %117 = vmatprep.subr.bf16.mxu0 0
  %118 = vmatpush2.bf16.msra.mxu0 0
  %119 = vmatprep.subr.bf16.mxu0 0
  %120 = vmatpush2.bf16.msra.mxu0 0
  %121 = vmatprep.subr.bf16.mxu0 0
  %122 = vmatpush2.bf16.msra.mxu0 0
  %123 = vmatprep.subr.bf16.mxu0 0
  %124 = vmatpush2.bf16.msra.mxu0 0
  %125 = vmatprep.subr.bf16.mxu0 0
  %126 = vmatpush2.bf16.msra.mxu0 0
  %127 = vmatprep.subr.bf16.mxu0 0
  %128 = vmatpush2.bf16.msra.mxu0 0
  %129 = vmatprep.mubr.bf16.mxu0 0
  %130 = vmatmul.mubr.bf16.gmra.mxu0 %v91
  %v131 = vpop.f32.mrf.mxu0
  %v132 = vadd.f32 %v38, %v131
  %v133 = vpop.f32.mrf.mxu0
  %v134 = vpop.f32.mrf.mxu0
  %v135 = vadd.f32 %v43, %v134
  %v136 = vpop.f32.mrf.mxu0
  %137 = vdwg.mxu0
  %v138 = vld [vmem:[%s3] sm:$0x7]
  %v139 = vlaneseq
  %v140 = vshrl.u32 %v139, 7
  %v141 = vsub.s32 0, %v140
  %v142 = vrot.slane %v138, %v141
  %v143 = vmul.f32 %v142, %v132
  %v144 = vlaneseq
  %v145 = vshrl.u32 %v144, 7
  %v146 = vsub.s32 1, %v145
  %v147 = vrot.slane %v138, %v146
  %v148 = vmul.f32 %v147, %v132
  %v150 = vrot.slane %v148, 4
  %v152 = vadd.f32 %v143, %v150
  %v153 = vlaneseq
  %v154 = vshrl.u32 %v153, 7
  %v155 = vsub.s32 2, %v154
  %v156 = vrot.slane %v138, %v155
  %v157 = vmul.f32 %v156, %v135
  %v158 = vadd.f32 %v152, %v157
  %159 = vst [vmem:[%s4] sm:$0xf] %v158
  // Predicated region
  $region18: #{_forward.8} parent=0 // pred_check
    _
  $region19: #{_forward.8} parent=0 // pred_check_branch
    %161 = sbr.rel (0) target = $region21
  $region20: #{_forward.8} parent=0 // pred_region
    _
  $region21: #{_forward.8} parent=0 // pred_fallthru
    _
  // Predicated region
  $region22: #{_forward.8} parent=0 // pred_check
    _
  $region23: #{_forward.8} parent=0 // pred_check_branch
    %163 = sbr.rel (0) target = $region25
  $region24: #{_forward.8} parent=0 // pred_region
    _
  $region25: #{_forward.8} parent=0 // pred_fallthru
    _

// kernel: _forward.9
$region0: #{_forward.9}
  #allocation0 [shape = 'u32[]', space=smem, size = 0x4, offset = 0x4, fixed_abs, tag = 'smem constant byte address 0x4 - core index']
  #allocation1 [shape = 'u32[144,128]{1,0:T(1,128)}', space=vmem, size = 0x12000, scoped, tag = 'internal scratch']
  %s0 = inlined_call_operand.vmem [shape: bf16[100,32], index: 0, kind: input, shape index: {}]
  %s1 = inlined_call_operand.vmem [shape: bf16[12,100], index: 1, kind: input, shape index: {}]
  %s2 = inlined_call_operand.vmem [shape: f32[12,1], index: 2, kind: input, shape index: {}]
  %s3 = inlined_call_operand.vmem [shape: f32[3,32], index: 3, kind: input, shape index: {}]
  %s4 = inlined_call_operand.vmem [shape: f32[4,32], index: 4, kind: input, shape index: {}]
  %s5 = inlined_call_operand.vmem [shape: f32[4,32], index: 5, kind: output, shape index: {}]
  %s6 = sld [smem:[#allocation0]]
  $region30: #{_forward.9} parent=0
    _
  %s8 = ssub.s32 1, %s6
  %s9 = scalar_select 0, %s8, %s6
  // Predicated region
  $region2: #{_forward.9} parent=0 // pred_check
    _
  $region3: #{_forward.9} parent=0 // pred_check_branch
    %11 = sbr.rel (0) target = $region5
  $region4: #{_forward.9} parent=0 // pred_region
    _
  $region5: #{_forward.9} parent=0 // pred_fallthru
    _
  // Predicated region
  $region6: #{_forward.9} parent=0 // pred_check
    _
  $region7: #{_forward.9} parent=0 // pred_check_branch
    %13 = sbr.rel (0) target = $region9
  $region8: #{_forward.9} parent=0 // pred_region
    _
  $region9: #{_forward.9} parent=0 // pred_fallthru
    _
  // Predicated region
  $region10: #{_forward.9} parent=0 // pred_check
    _
  $region11: #{_forward.9} parent=0 // pred_check_branch
    %15 = sbr.rel (0) target = $region13
  $region12: #{_forward.9} parent=0 // pred_region
    _
  $region13: #{_forward.9} parent=0 // pred_fallthru
    _
  // Predicated region
  $region14: #{_forward.9} parent=0 // pred_check
    _
  $region15: #{_forward.9} parent=0 // pred_check_branch
    %17 = sbr.rel (0) target = $region17
  $region16: #{_forward.9} parent=0 // pred_region
    _
  $region17: #{_forward.9} parent=0 // pred_fallthru
    _
  // Predicated region
  $region18: #{_forward.9} parent=0 // pred_check
    _
  $region19: #{_forward.9} parent=0 // pred_check_branch
    %19 = sbr.rel (0) target = $region21
  $region20: #{_forward.9} parent=0 // pred_region
    _
  $region21: #{_forward.9} parent=0 // pred_fallthru
    _
  %v21 = vld [vmem:[%s1] sm:$0xf]
  %v22 = vld [vmem:[%s1 + $0x4] sm:$0x3]
  %v23 = vld [vmem:[%s0] sm:$0xf]
  %v24 = vld [vmem:[%s0 + $0x4] sm:$0xf]
  %v25 = vld [vmem:[%s0 + $0x8] sm:$0xf]
  %v26 = vld [vmem:[%s0 + $0xc] sm:$0xf]
  %v27 = vld [vmem:[%s0 + $0x10] sm:$0xf]
  %v28 = vld [vmem:[%s0 + $0x14] sm:$0xf]
  %v29 = vld [vmem:[%s0 + $0x18] sm:$0xf]
  %v30 = vld [vmem:[%s0 + $0x1c] sm:$0xf]
  %v31 = vld [vmem:[%s0 + $0x20] sm:$0xf]
  %v32 = vld [vmem:[%s0 + $0x24] sm:$0xf]
  %v33 = vld [vmem:[%s0 + $0x28] sm:$0xf]
  %v34 = vld [vmem:[%s0 + $0x2c] sm:$0xf]
  %v35 = vld [vmem:[%s0 + $0x30] sm:$0x3]
  %v36 = vld [vmem:[%s2] sm:$0xff]
  %v37 = vld [vmem:[%s2 + $0x8] sm:$0xf]
  %39 = vset.pattern.permute.xlu0 0
  %40 = vperm.xlu0 %39, %v36
  %v41 = vpop.permute.xlu0 %40
  %44 = vset.pattern.permute.xlu0 0
  %45 = vperm.xlu0 %44, %v37
  %v46 = vpop.permute.xlu0 %45
  %v50 = vunpack.c.l.b16 %v21
  %v51 = vunpack.c.l.b16 %v22
  %v52 = vpack.c.b16 %v51, %v50
  %v66 = vunpack.c.l.b16 %v23
  %v67 = vunpack.c.l.b16 %v24
  %v68 = vunpack.c.l.b16 %v25
  %v69 = vunpack.c.l.b16 %v26
  %v70 = vunpack.c.l.b16 %v27
  %v71 = vunpack.c.l.b16 %v28
  %v72 = vunpack.c.l.b16 %v29
  %v73 = vunpack.c.l.b16 %v30
  %v74 = vunpack.c.l.b16 %v31
  %v75 = vunpack.c.l.b16 %v32
  %v76 = vunpack.c.l.b16 %v33
  %v77 = vunpack.c.l.b16 %v34
  %v78 = vunpack.c.l.b16 %v35
  %v79 = vpack.c.b16 %v67, %v66
  %v80 = vpack.c.b16 %v69, %v68
  %v81 = vpack.c.b16 %v71, %v70
  %v82 = vpack.c.b16 %v73, %v72
  %v83 = vpack.c.b16 %v75, %v74
  %v84 = vpack.c.b16 %v77, %v76
  %v85 = vpack.c.b16 %v78, %v78
  %vm92 = vcmask 818176
  %v94 = vsel %vm92, %v52, 0
  %vm96 = vcmask 1041408
  %v98 = vsel %vm96, %v85, 0
  %100 = vmatprep.subr.bf16.mxu0 0
  %101 = vmatpush1.bf16.msra.mxu0 0
  %102 = vmatprep.subr.bf16.mxu0 0
  %103 = vmatpush1.bf16.msra.mxu0 %v98
  %104 = vmatprep.subr.bf16.mxu0 0
  %105 = vmatpush1.bf16.msra.mxu0 %v84
  %106 = vmatprep.subr.bf16.mxu0 0
  %107 = vmatpush1.bf16.msra.mxu0 %v83
  %108 = vmatprep.subr.bf16.mxu0 0
  %109 = vmatpush1.bf16.msra.mxu0 %v82
  %110 = vmatprep.subr.bf16.mxu0 0
  %111 = vmatpush1.bf16.msra.mxu0 %v81
  %112 = vmatprep.subr.bf16.mxu0 0
  %113 = vmatpush1.bf16.msra.mxu0 %v80
  %114 = vmatprep.subr.bf16.mxu0 0
  %115 = vmatpush1.bf16.msra.mxu0 %v79
  %116 = vmatprep.subr.bf16.mxu0 0
  %117 = vmatpush2.bf16.msra.mxu0 0
  %118 = vmatprep.subr.bf16.mxu0 0
  %119 = vmatpush2.bf16.msra.mxu0 0
  %120 = vmatprep.subr.bf16.mxu0 0
  %121 = vmatpush2.bf16.msra.mxu0 0
  %122 = vmatprep.subr.bf16.mxu0 0
  %123 = vmatpush2.bf16.msra.mxu0 0
  %124 = vmatprep.subr.bf16.mxu0 0
  %125 = vmatpush2.bf16.msra.mxu0 0
  %126 = vmatprep.subr.bf16.mxu0 0
  %127 = vmatpush2.bf16.msra.mxu0 0
  %128 = vmatprep.subr.bf16.mxu0 0
  %129 = vmatpush2.bf16.msra.mxu0 0
  %130 = vmatprep.subr.bf16.mxu0 0
  %131 = vmatpush2.bf16.msra.mxu0 0
  %132 = vmatprep.mubr.bf16.mxu0 0
  %133 = vmatmul.mubr.bf16.gmra.mxu0 %v94
  %v134 = vpop.f32.mrf.mxu0
  %v135 = vadd.f32 %v41, %v134
  %v136 = vpop.f32.mrf.mxu0
  %v137 = vpop.f32.mrf.mxu0
  %v138 = vadd.f32 %v46, %v137
  %v139 = vpop.f32.mrf.mxu0
  %140 = vdwg.mxu0
  %v141 = vld [vmem:[%s3] sm:$0x7]
  %v142 = vlaneseq
  %v143 = vshrl.u32 %v142, 7
  %v144 = vsub.s32 0, %v143
  %v145 = vrot.slane %v141, %v144
  %v146 = vmul.f32 %v145, %v135
  %v147 = vlaneseq
  %v148 = vshrl.u32 %v147, 7
  %v149 = vsub.s32 1, %v148
  %v150 = vrot.slane %v141, %v149
  %v151 = vmul.f32 %v150, %v135
  %v153 = vrot.slane %v151, 4
  %v155 = vadd.f32 %v146, %v153
  %v156 = vlaneseq
  %v157 = vshrl.u32 %v156, 7
  %v158 = vsub.s32 2, %v157
  %v159 = vrot.slane %v141, %v158
  %v160 = vmul.f32 %v159, %v138
  %v161 = vadd.f32 %v155, %v160
  %v162 = vld [vmem:[%s4] sm:$0xf]
  %v163 = vadd.f32 %v161, %v162
  %vm164 = vcmask 257024
  %165 = vst.msk [vmem:[%s5] sm:$0xf] %vm164, %v163
  // Predicated region
  $region22: #{_forward.9} parent=0 // pred_check
    _
  $region23: #{_forward.9} parent=0 // pred_check_branch
    %167 = sbr.rel (0) target = $region25
  $region24: #{_forward.9} parent=0 // pred_region
    _
  $region25: #{_forward.9} parent=0 // pred_fallthru
    _
  // Predicated region
  $region26: #{_forward.9} parent=0 // pred_check
    _
  $region27: #{_forward.9} parent=0 // pred_check_branch
    %169 = sbr.rel (0) target = $region29
  $region28: #{_forward.9} parent=0 // pred_region
    _
  $region29: #{_forward.9} parent=0 // pred_fallthru
    _

// kernel: _forward.10
$region0: #{_forward.10}
  #allocation0 [shape = 'u32[]', space=smem, size = 0x4, offset = 0x4, fixed_abs, tag = 'smem constant byte address 0x4 - core index']
  #allocation1 [shape = 'u32[144,128]{1,0:T(1,128)}', space=vmem, size = 0x12000, scoped, tag = 'internal scratch']
  %s0 = inlined_call_operand.vmem [shape: bf16[100,32], index: 0, kind: input, shape index: {}]
  %s1 = inlined_call_operand.vmem [shape: bf16[12,100], index: 1, kind: input, shape index: {}]
  %s2 = inlined_call_operand.vmem [shape: f32[12,1], index: 2, kind: input, shape index: {}]
  %s3 = inlined_call_operand.vmem [shape: f32[3,32], index: 3, kind: input, shape index: {}]
  %s4 = inlined_call_operand.vmem [shape: f32[4,32], index: 4, kind: output, shape index: {}]
  %s5 = sld [smem:[#allocation0]]
  $region26: #{_forward.10} parent=0
    _
  %s7 = ssub.s32 1, %s5
  %s8 = scalar_select 0, %s7, %s5
  // Predicated region
  $region2: #{_forward.10} parent=0 // pred_check
    _
  $region3: #{_forward.10} parent=0 // pred_check_branch
    %10 = sbr.rel (0) target = $region5
  $region4: #{_forward.10} parent=0 // pred_region
    _
  $region5: #{_forward.10} parent=0 // pred_fallthru
    _
  // Predicated region
  $region6: #{_forward.10} parent=0 // pred_check
    _
  $region7: #{_forward.10} parent=0 // pred_check_branch
    %12 = sbr.rel (0) target = $region9
  $region8: #{_forward.10} parent=0 // pred_region
    _
  $region9: #{_forward.10} parent=0 // pred_fallthru
    _
  // Predicated region
  $region10: #{_forward.10} parent=0 // pred_check
    _
  $region11: #{_forward.10} parent=0 // pred_check_branch
    %14 = sbr.rel (0) target = $region13
  $region12: #{_forward.10} parent=0 // pred_region
    _
  $region13: #{_forward.10} parent=0 // pred_fallthru
    _
  // Predicated region
  $region14: #{_forward.10} parent=0 // pred_check
    _
  $region15: #{_forward.10} parent=0 // pred_check_branch
    %16 = sbr.rel (0) target = $region17
  $region16: #{_forward.10} parent=0 // pred_region
    _
  $region17: #{_forward.10} parent=0 // pred_fallthru
    _
  %v18 = vld [vmem:[%s1] sm:$0xf]
  %v19 = vld [vmem:[%s1 + $0x4] sm:$0x3]
  %v20 = vld [vmem:[%s0] sm:$0xf]
  %v21 = vld [vmem:[%s0 + $0x4] sm:$0xf]
  %v22 = vld [vmem:[%s0 + $0x8] sm:$0xf]
  %v23 = vld [vmem:[%s0 + $0xc] sm:$0xf]
  %v24 = vld [vmem:[%s0 + $0x10] sm:$0xf]
  %v25 = vld [vmem:[%s0 + $0x14] sm:$0xf]
  %v26 = vld [vmem:[%s0 + $0x18] sm:$0xf]
  %v27 = vld [vmem:[%s0 + $0x1c] sm:$0xf]
  %v28 = vld [vmem:[%s0 + $0x20] sm:$0xf]
  %v29 = vld [vmem:[%s0 + $0x24] sm:$0xf]
  %v30 = vld [vmem:[%s0 + $0x28] sm:$0xf]
  %v31 = vld [vmem:[%s0 + $0x2c] sm:$0xf]
  %v32 = vld [vmem:[%s0 + $0x30] sm:$0x3]
  %v33 = vld [vmem:[%s2] sm:$0xff]
  %v34 = vld [vmem:[%s2 + $0x8] sm:$0xf]
  %36 = vset.pattern.permute.xlu0 0
  %37 = vperm.xlu0 %36, %v33
  %v38 = vpop.permute.xlu0 %37
  %41 = vset.pattern.permute.xlu0 0
  %42 = vperm.xlu0 %41, %v34
  %v43 = vpop.permute.xlu0 %42
  %v47 = vunpack.c.l.b16 %v18
  %v48 = vunpack.c.l.b16 %v19
  %v49 = vpack.c.b16 %v48, %v47
  %v63 = vunpack.c.l.b16 %v20
  %v64 = vunpack.c.l.b16 %v21
  %v65 = vunpack.c.l.b16 %v22
  %v66 = vunpack.c.l.b16 %v23
  %v67 = vunpack.c.l.b16 %v24
  %v68 = vunpack.c.l.b16 %v25
  %v69 = vunpack.c.l.b16 %v26
  %v70 = vunpack.c.l.b16 %v27
  %v71 = vunpack.c.l.b16 %v28
  %v72 = vunpack.c.l.b16 %v29
  %v73 = vunpack.c.l.b16 %v30
  %v74 = vunpack.c.l.b16 %v31
  %v75 = vunpack.c.l.b16 %v32
  %v76 = vpack.c.b16 %v64, %v63
  %v77 = vpack.c.b16 %v66, %v65
  %v78 = vpack.c.b16 %v68, %v67
  %v79 = vpack.c.b16 %v70, %v69
  %v80 = vpack.c.b16 %v72, %v71
  %v81 = vpack.c.b16 %v74, %v73
  %v82 = vpack.c.b16 %v75, %v75
  %vm89 = vcmask 818176
  %v91 = vsel %vm89, %v49, 0
  %vm93 = vcmask 1041408
  %v95 = vsel %vm93, %v82, 0
  %97 = vmatprep.subr.bf16.mxu0 0
  %98 = vmatpush1.bf16.msra.mxu0 0
  %99 = vmatprep.subr.bf16.mxu0 0
  %100 = vmatpush1.bf16.msra.mxu0 %v95
  %101 = vmatprep.subr.bf16.mxu0 0
  %102 = vmatpush1.bf16.msra.mxu0 %v81
  %103 = vmatprep.subr.bf16.mxu0 0
  %104 = vmatpush1.bf16.msra.mxu0 %v80
  %105 = vmatprep.subr.bf16.mxu0 0
  %106 = vmatpush1.bf16.msra.mxu0 %v79
  %107 = vmatprep.subr.bf16.mxu0 0
  %108 = vmatpush1.bf16.msra.mxu0 %v78
  %109 = vmatprep.subr.bf16.mxu0 0
  %110 = vmatpush1.bf16.msra.mxu0 %v77
  %111 = vmatprep.subr.bf16.mxu0 0
  %112 = vmatpush1.bf16.msra.mxu0 %v76
  %113 = vmatprep.subr.bf16.mxu0 0
  %114 = vmatpush2.bf16.msra.mxu0 0
  %115 = vmatprep.subr.bf16.mxu0 0
  %116 = vmatpush2.bf16.msra.mxu0 0
  %117 = vmatprep.subr.bf16.mxu0 0
  %118 = vmatpush2.bf16.msra.mxu0 0
  %119 = vmatprep.subr.bf16.mxu0 0
  %120 = vmatpush2.bf16.msra.mxu0 0
  %121 = vmatprep.subr.bf16.mxu0 0
  %122 = vmatpush2.bf16.msra.mxu0 0
  %123 = vmatprep.subr.bf16.mxu0 0
  %124 = vmatpush2.bf16.msra.mxu0 0
  %125 = vmatprep.subr.bf16.mxu0 0
  %126 = vmatpush2.bf16.msra.mxu0 0
  %127 = vmatprep.subr.bf16.mxu0 0
  %128 = vmatpush2.bf16.msra.mxu0 0
  %129 = vmatprep.mubr.bf16.mxu0 0
  %130 = vmatmul.mubr.bf16.gmra.mxu0 %v91
  %v131 = vpop.f32.mrf.mxu0
  %v132 = vadd.f32 %v38, %v131
  %v133 = vpop.f32.mrf.mxu0
  %v134 = vpop.f32.mrf.mxu0
  %v135 = vadd.f32 %v43, %v134
  %v136 = vpop.f32.mrf.mxu0
  %137 = vdwg.mxu0
  %v138 = vld [vmem:[%s3] sm:$0x7]
  %v139 = vlaneseq
  %v140 = vshrl.u32 %v139, 7
  %v141 = vsub.s32 0, %v140
  %v142 = vrot.slane %v138, %v141
  %v143 = vmul.f32 %v142, %v132
  %v144 = vlaneseq
  %v145 = vshrl.u32 %v144, 7
  %v146 = vsub.s32 1, %v145
  %v147 = vrot.slane %v138, %v146
  %v148 = vmul.f32 %v147, %v132
  %v150 = vrot.slane %v148, 4
  %v152 = vadd.f32 %v143, %v150
  %v153 = vlaneseq
  %v154 = vshrl.u32 %v153, 7
  %v155 = vsub.s32 2, %v154
  %v156 = vrot.slane %v138, %v155
  %v157 = vmul.f32 %v156, %v135
  %v158 = vadd.f32 %v152, %v157
  %vm159 = vcmask 257024
  %160 = vst.msk [vmem:[%s4] sm:$0xf] %vm159, %v158
  // Predicated region
  $region18: #{_forward.10} parent=0 // pred_check
    _
  $region19: #{_forward.10} parent=0 // pred_check_branch
    %162 = sbr.rel (0) target = $region21
  $region20: #{_forward.10} parent=0 // pred_region
    _
  $region21: #{_forward.10} parent=0 // pred_fallthru
    _
  // Predicated region
  $region22: #{_forward.10} parent=0 // pred_check
    _
  $region23: #{_forward.10} parent=0 // pred_check_branch
    %164 = sbr.rel (0) target = $region25
  $region24: #{_forward.10} parent=0 // pred_region
    _
  $region25: #{_forward.10} parent=0 // pred_fallthru
    _

// kernel: _forward.11
$region0: #{_forward.11}
  #allocation0 [shape = 'u32[]', space=smem, size = 0x4, offset = 0x4, fixed_abs, tag = 'smem constant byte address 0x4 - core index']
  #allocation1 [shape = 'u32[144,128]{1,0:T(1,128)}', space=vmem, size = 0x12000, scoped, tag = 'internal scratch']
  #allocation2 [shape = 'f32[1,1]{1,0:T(1,128)S(1)}', space=vmem, size = 0x200, scoped, tag = 'scoped memory for _forward.11']
  %s0 = inlined_call_operand.vmem [shape: bf16[100,32], index: 0, kind: input, shape index: {}]
  %s1 = inlined_call_operand.vmem [shape: bf16[12,100], index: 1, kind: input, shape index: {}]
  %s2 = inlined_call_operand.vmem [shape: f32[12,1], index: 2, kind: input, shape index: {}]
  %s3 = inlined_call_operand.vmem [shape: f32[3,32], index: 3, kind: input, shape index: {}]
  %s4 = inlined_call_operand.vmem [shape: f32[4,32], index: 4, kind: input, shape index: {}]
  %s5 = inlined_call_operand.vmem [shape: f32[32,2], index: 5, kind: input, shape index: {}]
  %s6 = inlined_call_operand.vmem [shape: f32[1,4], index: 6, kind: input, shape index: {}]
  %s7 = inlined_call_operand.<no memory space> [shape: f32[1,1], index: 7, kind: input, shape index: {}]
  %s8 = inlined_call_operand.hbm [shape: f32[1,2], index: 8, kind: output, shape index: {}]
  %s9 = sld [smem:[#allocation0]]
  $region42: #{_forward.11} parent=0
    _
  %s11 = ssub.s32 1, %s9
  %s12 = scalar_select 0, %s11, %s9
  %v13 = vstv %s7
  %14 = vst [vmem:[#allocation2] sm:$0x1] %v13
  $region1: #{_forward.11} parent=0
    #allocation3 [shape = 'u8[512]{0}', space=vmem, size = 0x400, scoped, tag = 'output window, operand 0, single buffered']
    #allocation4 [shape = 's32[1]{0}', space=sflag, size = 0x4, scoped, tag = 'scoped memory for _forward.11']
    %15 = vsyncpa [#allocation4], 0
    // Predicated region
    $region2: #{_forward.11} parent=1 // pred_check
      _
    $region3: #{_forward.11} parent=1 // pred_check_branch
      %17 = sbr.rel (0) target = $region5
    $region4: #{_forward.11} parent=1 // pred_region
      _
    $region5: #{_forward.11} parent=1 // pred_fallthru
      _
    // Predicated region
    $region6: #{_forward.11} parent=1 // pred_check
      _
    $region7: #{_forward.11} parent=1 // pred_check_branch
      %19 = sbr.rel (0) target = $region9
    $region8: #{_forward.11} parent=1 // pred_region
      _
    $region9: #{_forward.11} parent=1 // pred_fallthru
      _
    // Predicated region
    $region10: #{_forward.11} parent=1 // pred_check
      _
    $region11: #{_forward.11} parent=1 // pred_check_branch
      %21 = sbr.rel (0) target = $region13
    $region12: #{_forward.11} parent=1 // pred_region
      _
    $region13: #{_forward.11} parent=1 // pred_fallthru
      _
    // Predicated region
    $region14: #{_forward.11} parent=1 // pred_check
      _
    $region15: #{_forward.11} parent=1 // pred_check_branch
      %23 = sbr.rel (0) target = $region17
    $region16: #{_forward.11} parent=1 // pred_region
      _
    $region17: #{_forward.11} parent=1 // pred_fallthru
      _
    // Predicated region
    $region18: #{_forward.11} parent=1 // pred_check
      _
    $region19: #{_forward.11} parent=1 // pred_check_branch
      %25 = sbr.rel (0) target = $region21
    $region20: #{_forward.11} parent=1 // pred_region
      _
    $region21: #{_forward.11} parent=1 // pred_fallthru
      _
    // Predicated region
    $region22: #{_forward.11} parent=1 // pred_check
      _
    $region23: #{_forward.11} parent=1 // pred_check_branch
      %27 = sbr.rel (0) target = $region25
    $region24: #{_forward.11} parent=1 // pred_region
      _
    $region25: #{_forward.11} parent=1 // pred_fallthru
      _
    // Predicated region
    $region26: #{_forward.11} parent=1 // pred_check
      _
    $region27: #{_forward.11} parent=1 // pred_check_branch
      %29 = sbr.rel (0) target = $region29
    $region28: #{_forward.11} parent=1 // pred_region
      _
    $region29: #{_forward.11} parent=1 // pred_fallthru
      _
    // Predicated region
    $region30: #{_forward.11} parent=1 // pred_check
      _
    $region31: #{_forward.11} parent=1 // pred_check_branch
      %31 = sbr.rel (0) target = $region33
    $region32: #{_forward.11} parent=1 // pred_region
      _
    $region33: #{_forward.11} parent=1 // pred_fallthru
      _
    %v33 = vld [vmem:[%s1] sm:$0xf]
    %v34 = vld [vmem:[%s1 + $0x4] sm:$0x3]
    %v35 = vld [vmem:[%s0] sm:$0xf]
    %v36 = vld [vmem:[%s0 + $0x4] sm:$0xf]
    %v37 = vld [vmem:[%s0 + $0x8] sm:$0xf]
    %v38 = vld [vmem:[%s0 + $0xc] sm:$0xf]
    %v39 = vld [vmem:[%s0 + $0x10] sm:$0xf]
    %v40 = vld [vmem:[%s0 + $0x14] sm:$0xf]
    %v41 = vld [vmem:[%s0 + $0x18] sm:$0xf]
    %v42 = vld [vmem:[%s0 + $0x1c] sm:$0xf]
    %v43 = vld [vmem:[%s0 + $0x20] sm:$0xf]
    %v44 = vld [vmem:[%s0 + $0x24] sm:$0xf]
    %v45 = vld [vmem:[%s0 + $0x28] sm:$0xf]
    %v46 = vld [vmem:[%s0 + $0x2c] sm:$0xf]
    %v47 = vld [vmem:[%s0 + $0x30] sm:$0x3]
    %v48 = vld [vmem:[%s2] sm:$0xff]
    %v49 = vld [vmem:[%s2 + $0x8] sm:$0xf]
    %51 = vset.pattern.permute.xlu0 0
    %52 = vperm.xlu0 %51, %v48
    %v53 = vpop.permute.xlu0 %52
    %56 = vset.pattern.permute.xlu0 0
    %57 = vperm.xlu0 %56, %v49
    %v58 = vpop.permute.xlu0 %57
    %v62 = vunpack.c.l.b16 %v33
    %v63 = vunpack.c.l.b16 %v34
    %v64 = vpack.c.b16 %v63, %v62
    %v78 = vunpack.c.l.b16 %v35
    %v79 = vunpack.c.l.b16 %v36
    %v80 = vunpack.c.l.b16 %v37
    %v81 = vunpack.c.l.b16 %v38
    %v82 = vunpack.c.l.b16 %v39
    %v83 = vunpack.c.l.b16 %v40
    %v84 = vunpack.c.l.b16 %v41
    %v85 = vunpack.c.l.b16 %v42
    %v86 = vunpack.c.l.b16 %v43
    %v87 = vunpack.c.l.b16 %v44
    %v88 = vunpack.c.l.b16 %v45
    %v89 = vunpack.c.l.b16 %v46
    %v90 = vunpack.c.l.b16 %v47
    %v91 = vpack.c.b16 %v79, %v78
    %v92 = vpack.c.b16 %v81, %v80
    %v93 = vpack.c.b16 %v83, %v82
    %v94 = vpack.c.b16 %v85, %v84
    %v95 = vpack.c.b16 %v87, %v86
    %v96 = vpack.c.b16 %v89, %v88
    %v97 = vpack.c.b16 %v90, %v90
    %vm104 = vcmask 818176
    %v106 = vsel %vm104, %v64, 0
    %vm108 = vcmask 1041408
    %v110 = vsel %vm108, %v97, 0
    %112 = vmatprep.subr.bf16.mxu0 0
    %113 = vmatpush1.bf16.msra.mxu0 0
    %114 = vmatprep.subr.bf16.mxu0 0
    %115 = vmatpush1.bf16.msra.mxu0 %v110
    %116 = vmatprep.subr.bf16.mxu0 0
    %117 = vmatpush1.bf16.msra.mxu0 %v96
    %118 = vmatprep.subr.bf16.mxu0 0
    %119 = vmatpush1.bf16.msra.mxu0 %v95
    %120 = vmatprep.subr.bf16.mxu0 0
    %121 = vmatpush1.bf16.msra.mxu0 %v94
    %122 = vmatprep.subr.bf16.mxu0 0
    %123 = vmatpush1.bf16.msra.mxu0 %v93
    %124 = vmatprep.subr.bf16.mxu0 0
    %125 = vmatpush1.bf16.msra.mxu0 %v92
    %126 = vmatprep.subr.bf16.mxu0 0
    %127 = vmatpush1.bf16.msra.mxu0 %v91
    %128 = vmatprep.subr.bf16.mxu0 0
    %129 = vmatpush2.bf16.msra.mxu0 0
    %130 = vmatprep.subr.bf16.mxu0 0
    %131 = vmatpush2.bf16.msra.mxu0 0
    %132 = vmatprep.subr.bf16.mxu0 0
    %133 = vmatpush2.bf16.msra.mxu0 0
    %134 = vmatprep.subr.bf16.mxu0 0
    %135 = vmatpush2.bf16.msra.mxu0 0
    %136 = vmatprep.subr.bf16.mxu0 0
    %137 = vmatpush2.bf16.msra.mxu0 0
    %138 = vmatprep.subr.bf16.mxu0 0
    %139 = vmatpush2.bf16.msra.mxu0 0
    %140 = vmatprep.subr.bf16.mxu0 0
    %141 = vmatpush2.bf16.msra.mxu0 0
    %142 = vmatprep.subr.bf16.mxu0 0
    %143 = vmatpush2.bf16.msra.mxu0 0
    %144 = vmatprep.mubr.bf16.mxu0 0
    %145 = vmatmul.mubr.bf16.gmra.mxu0 %v106
    %v146 = vpop.f32.mrf.mxu0
    %v147 = vadd.f32 %v53, %v146
    %v148 = vpop.f32.mrf.mxu0
    %v149 = vpop.f32.mrf.mxu0
    %v150 = vadd.f32 %v58, %v149
    %v151 = vpop.f32.mrf.mxu0
    %152 = vdwg.mxu0
    %v153 = vld [vmem:[%s3] sm:$0x7]
    %v154 = vlaneseq
    %v155 = vshrl.u32 %v154, 7
    %v156 = vsub.s32 0, %v155
    %v157 = vrot.slane %v153, %v156
    %v158 = vmul.f32 %v157, %v147
    %v159 = vlaneseq
    %v160 = vshrl.u32 %v159, 7
    %v161 = vsub.s32 1, %v160
    %v162 = vrot.slane %v153, %v161
    %v163 = vmul.f32 %v162, %v147
    %v165 = vrot.slane %v163, 4
    %v167 = vadd.f32 %v158, %v165
    %v168 = vlaneseq
    %v169 = vshrl.u32 %v168, 7
    %v170 = vsub.s32 2, %v169
    %v171 = vrot.slane %v153, %v170
    %v172 = vmul.f32 %v171, %v150
    %v173 = vadd.f32 %v167, %v172
    %v174 = vld [vmem:[%s4] sm:$0xf]
    %v175 = vadd.f32 %v173, %v174
    %v176 = vmax.f32 %v175, 0.0
    %v177 = vld [vmem:[%s5] sm:$0xff]
    %v178 = vld [vmem:[%s5 + $0x8] sm:$0xff]
    %v179 = vld [vmem:[%s5 + $0x10] sm:$0xff]
    %v180 = vld [vmem:[%s5 + $0x18] sm:$0xff]
    %vm181 = vcmask 261120
    %v183 = vsel %vm181, %v176, 0
    %185 = vmatprep.subr.mxu0 0.0
    %186 = vmatpush1.msra.mxu0 0.0
    %187 = vmatprep.subr.mxu0 0.0
    %188 = vmatpush1.msra.mxu0 0.0
    %189 = vmatprep.subr.mxu0 0.0
    %190 = vmatpush1.msra.mxu0 0.0
    %191 = vmatprep.subr.mxu0 0.0
    %192 = vmatpush1.msra.mxu0 0.0
    %193 = vmatprep.subr.mxu0 0.0
    %194 = vmatpush1.msra.mxu0 0.0
    %195 = vmatprep.subr.mxu0 0.0
    %196 = vmatpush1.msra.mxu0 0.0
    %197 = vmatprep.subr.mxu0 0.0
    %198 = vmatpush1.msra.mxu0 0.0
    %199 = vmatprep.subr.mxu0 0.0
    %200 = vmatpush1.msra.mxu0 0.0
    %201 = vmatprep.subr.mxu0 0.0
    %202 = vmatpush1.msra.mxu0 0.0
    %203 = vmatprep.subr.mxu0 0.0
    %204 = vmatpush1.msra.mxu0 0.0
    %205 = vmatprep.subr.mxu0 0.0
    %206 = vmatpush1.msra.mxu0 0.0
    %207 = vmatprep.subr.mxu0 0.0
    %208 = vmatpush1.msra.mxu0 0.0
    %209 = vmatprep.subr.mxu0 0.0
    %210 = vmatpush1.msra.mxu0 %v180
    %211 = vmatprep.subr.mxu0 0.0
    %212 = vmatpush1.msra.mxu0 %v179
    %213 = vmatprep.subr.mxu0 0.0
    %214 = vmatpush1.msra.mxu0 %v178
    %215 = vmatprep.subr.mxu0 0.0
    %216 = vmatpush1.msra.mxu0 %v177
    %217 = vmatprep.subr.mxu0 0.0
    %218 = vmatpush2.msra.mxu0 0.0
    %219 = vmatprep.subr.mxu0 0.0
    %220 = vmatpush2.msra.mxu0 0.0
    %221 = vmatprep.subr.mxu0 0.0
    %222 = vmatpush2.msra.mxu0 0.0
    %223 = vmatprep.subr.mxu0 0.0
    %224 = vmatpush2.msra.mxu0 0.0
    %225 = vmatprep.subr.mxu0 0.0
    %226 = vmatpush2.msra.mxu0 0.0
    %227 = vmatprep.subr.mxu0 0.0
    %228 = vmatpush2.msra.mxu0 0.0
    %229 = vmatprep.subr.mxu0 0.0
    %230 = vmatpush2.msra.mxu0 0.0
    %231 = vmatprep.subr.mxu0 0.0
    %232 = vmatpush2.msra.mxu0 0.0
    %233 = vmatprep.subr.mxu0 0.0
    %234 = vmatpush2.msra.mxu0 0.0
    %235 = vmatprep.subr.mxu0 0.0
    %236 = vmatpush2.msra.mxu0 0.0
    %237 = vmatprep.subr.mxu0 0.0
    %238 = vmatpush2.msra.mxu0 0.0
    %239 = vmatprep.subr.mxu0 0.0
    %240 = vmatpush2.msra.mxu0 0.0
    %241 = vmatprep.subr.mxu0 0.0
    %242 = vmatpush2.msra.mxu0 0.0
    %243 = vmatprep.subr.mxu0 0.0
    %244 = vmatpush2.msra.mxu0 0.0
    %245 = vmatprep.subr.mxu0 0.0
    %246 = vmatpush2.msra.mxu0 0.0
    %247 = vmatprep.subr.mxu0 0.0
    %248 = vmatpush2.msra.mxu0 0.0
    %249 = vmatprep.mubr.f32.mxu0 0.0
    %250 = vmatmul.mubr.f32.gmra.mxu0 %v183
    %v251 = vpop.f32.mrf.mxu0
    %v252 = vadd.f32 0.0, %v251
    %v253 = vpop.f32.mrf.mxu0
    %254 = vdwg.mxu0
    %v255 = vld [vmem:[%s6] sm:$0x1]
    %v256 = vld [vmem:[#allocation2] sm:$0x1]
    %258 = vset.pattern.permute.xlu0 0
    %259 = vperm.xlu0 %258, %v256
    %v260 = vpop.permute.xlu0 %259
    %v262 = vlaneseq
    %v263 = vshrl.u32 %v262, 7
    %v264 = vsub.s32 0, %v263
    %v265 = vrot.slane %v260, %v264
    %vm266 = vcmask 31744
    %v268 = vsel %vm266, %v255, 0
    %vm270 = vcmask 1043456
    %v272 = vsel %vm270, %v252, 0
    %274 = vmatprep.subr.mxu0 0.0
    %275 = vmatpush1.msra.mxu0 0.0
    %276 = vmatprep.subr.mxu0 0.0
    %277 = vmatpush1.msra.mxu0 0.0
    %278 = vmatprep.subr.mxu0 0.0
    %279 = vmatpush1.msra.mxu0 0.0
    %280 = vmatprep.subr.mxu0 0.0
    %281 = vmatpush1.msra.mxu0 0.0
    %282 = vmatprep.subr.mxu0 0.0
    %283 = vmatpush1.msra.mxu0 0.0
    %284 = vmatprep.subr.mxu0 0.0
    %285 = vmatpush1.msra.mxu0 0.0
    %286 = vmatprep.subr.mxu0 0.0
    %287 = vmatpush1.msra.mxu0 0.0
    %288 = vmatprep.subr.mxu0 0.0
    %289 = vmatpush1.msra.mxu0 0.0
    %290 = vmatprep.subr.mxu0 0.0
    %291 = vmatpush1.msra.mxu0 0.0
    %292 = vmatprep.subr.mxu0 0.0
    %293 = vmatpush1.msra.mxu0 0.0
    %294 = vmatprep.subr.mxu0 0.0
    %295 = vmatpush1.msra.mxu0 0.0
    %296 = vmatprep.subr.mxu0 0.0
    %297 = vmatpush1.msra.mxu0 0.0
    %298 = vmatprep.subr.mxu0 0.0
    %299 = vmatpush1.msra.mxu0 0.0
    %300 = vmatprep.subr.mxu0 0.0
    %301 = vmatpush1.msra.mxu0 0.0
    %302 = vmatprep.subr.mxu0 0.0
    %303 = vmatpush1.msra.mxu0 0.0
    %304 = vmatprep.subr.mxu0 0.0
    %305 = vmatpush1.msra.mxu0 %v272
    %306 = vmatprep.subr.mxu0 0.0
    %307 = vmatpush2.msra.mxu0 0.0
    %308 = vmatprep.subr.mxu0 0.0
    %309 = vmatpush2.msra.mxu0 0.0
    %310 = vmatprep.subr.mxu0 0.0
    %311 = vmatpush2.msra.mxu0 0.0
    %312 = vmatprep.subr.mxu0 0.0
    %313 = vmatpush2.msra.mxu0 0.0
    %314 = vmatprep.subr.mxu0 0.0
    %315 = vmatpush2.msra.mxu0 0.0
    %316 = vmatprep.subr.mxu0 0.0
    %317 = vmatpush2.msra.mxu0 0.0
    %318 = vmatprep.subr.mxu0 0.0
    %319 = vmatpush2.msra.mxu0 0.0
    %320 = vmatprep.subr.mxu0 0.0
    %321 = vmatpush2.msra.mxu0 0.0
    %322 = vmatprep.subr.mxu0 0.0
    %323 = vmatpush2.msra.mxu0 0.0
    %324 = vmatprep.subr.mxu0 0.0
    %325 = vmatpush2.msra.mxu0 0.0
    %326 = vmatprep.subr.mxu0 0.0
    %327 = vmatpush2.msra.mxu0 0.0
    %328 = vmatprep.subr.mxu0 0.0
    %329 = vmatpush2.msra.mxu0 0.0
    %330 = vmatprep.subr.mxu0 0.0
    %331 = vmatpush2.msra.mxu0 0.0
    %332 = vmatprep.subr.mxu0 0.0
    %333 = vmatpush2.msra.mxu0 0.0
    %334 = vmatprep.subr.mxu0 0.0
    %335 = vmatpush2.msra.mxu0 0.0
    %336 = vmatprep.subr.mxu0 0.0
    %337 = vmatpush2.msra.mxu0 0.0
    %338 = vmatprep.mubr.f32.mxu0 0.0
    %339 = vmatmul.mubr.f32.gmra.mxu0 %v268
    %v340 = vpop.f32.mrf.mxu0
    %v341 = vadd.f32 %v265, %v340
    %v342 = vpop.f32.mrf.mxu0
    %343 = vdwg.mxu0
    %vm344 = vcmask 8192
    %345 = vst.msk [vmem:[#allocation3] sm:$0x1] %vm344, %v341
    // Predicated region
    $region34: #{_forward.11} parent=1 // pred_check
      _
    $region35: #{_forward.11} parent=1 // pred_check_branch
      %347 = sbr.rel (0) target = $region37
    $region36: #{_forward.11} parent=1 // pred_region
      %s349 = ssub.s32 16, 16
      %350 = vsyncadd [#allocation4], %s349
      %s352 = sshll.u32 [#allocation3], 4
      %s353 = int_to_ptr.vmem [resolvable:$true] %s352
      %355 = dma.vmem_to_hbm [thread:$0]  %s353, 16, %s8, [#allocation4]
    $region37: #{_forward.11} parent=1 // pred_fallthru
      _
    // Predicated region
    $region38: #{_forward.11} parent=1 // pred_check
      _
    $region39: #{_forward.11} parent=1 // pred_check_branch
      %357 = sbr.rel (0) target = $region41
    $region40: #{_forward.11} parent=1 // pred_region
      %358 = dma.done [#allocation4], 16
    $region41: #{_forward.11} parent=1 // pred_fallthru
      _
    %359 = vsyncpa [#allocation4], 1

</llo_original>
